<compile_context>
chip_gen: v7x
topology: tpu7x:2x2x1
jax: 0.10.0
libtpu: 0.0.40
codegen_flags: <defaults>
</compile_context>

<pallas_src>
import functools
import math

import jax
import jax.numpy as jnp
import numpy as np
from jax.experimental import pallas as pl
from jax.experimental.pallas import tpu as pltpu


def make_divisible(x, divisible_by=8):
    return int(math.ceil(x * 1.0 / divisible_by) * divisible_by)


def _pick_batch_block(n, hwp, target_lanes=1024, min_lanes=512):
    """Images per grid step: largest divisor of n whose lane footprint fits
    target_lanes; back off to keep >= 2 grid steps (v7x megacore) only if each
    step still keeps >= min_lanes lanes."""
    best = 1
    for cand in range(1, n + 1):
        if n % cand == 0 and cand * hwp <= target_lanes:
            best = cand
    if best > 1 and n // best == 1:
        alt = 0
        for cand in range(1, best):
            if n % cand == 0 and cand * hwp >= min_lanes:
                alt = cand
        if alt:
            best = alt
    return best


def _dw_boundary_masks(H, W, hwp, K):
    """(K*K, hwp) f32: 1.0 where tap (dy, dx) reads a valid in-image neighbour."""
    p = K // 2
    q = np.arange(hwp)
    row, col = q // W, q % W
    real = q < H * W
    m = np.zeros((K * K, hwp), np.float32)
    for dy in range(K):
        for dx in range(K):
            ky, kx = dy - p, dx - p
            ok = (real & (row + ky >= 0) & (row + ky < H) &
                  (col + kx >= 0) & (col + kx < W))
            m[dy * K + dx] = ok.astype(np.float32)
    return m


def bottleneck_kernel(x_ref, dwm_ref, pool_ref, w_exp_ref, b1_ref, w_dw_ref, b2_ref,
                      wse1_ref, bse1_ref, wse2_ref, bse2_ref, w_proj_ref, b3_ref,
                      o_ref, *, B_blk, HWp, W, K, apply_skip, use_mxu):
    x = x_ref[...]                                  # (Cin, L) — batch+spatial on lanes
    L = x.shape[1]
    p = K // 2

    def conv1x1(w_ref, rhs):
        """(Co, Ci) @ (Ci, L) -> f32 (Co, L).  bf16 MXU matmul for big contractions,
        f32 VPU broadcast-MACs when the contracting dim is too small to fill it."""
        w = w_ref[...]
        if use_mxu:
            return jnp.dot(w, rhs.astype(w.dtype), preferred_element_type=jnp.float32)
        acc = w[:, 0:1] * rhs[0:1, :]
        for c in range(1, rhs.shape[0]):
            acc = acc + w[:, c:c + 1] * rhs[c:c + 1, :]
        return acc.astype(jnp.float32)

    # ---- 1x1 expand (BN scale pre-folded) + bias + ReLU6 -------------------
    h = jnp.clip(conv1x1(w_exp_ref, x) + b1_ref[...], 0.0, 6.0)          # (Ch, L)

    # ---- depthwise KxK, stride 1: lane rolls (XLU) + host-precomputed masks -
    w_dw = w_dw_ref[...]                            # (Ch, K*K), BN-folded, loaded once
    dwm = dwm_ref[...]                              # (K*K, L) boundary masks
    acc = None
    for dy in range(K):
        for dx in range(K):
            idx = dy * K + dx
            s = (dy - p) * W + (dx - p)             # flat within-image neighbour offset
            shifted = h if s == 0 else pltpu.roll(h, (-s) % L, axis=1)
            term = shifted * (w_dw[:, idx:idx + 1] * dwm[idx:idx + 1, :])
            acc = term if acc is None else acc + term
    h = jnp.clip(acc + b2_ref[...], 0.0, 6.0)

    # ---- SE (per image) + 1x1 project + bias + residual, stored per image ---
    pm = pool_ref[...]                              # (1, HWp): 1/HW on real lanes, 0 on pad
    wse1, bse1 = wse1_ref[...], bse1_ref[...]       # (Ch, red), (1, red)
    wse2, bse2 = wse2_ref[...], bse2_ref[...]       # (Ch, red), (Ch, 1)
    b3 = b3_ref[...]
    for b in range(B_blk):                          # tiny static loop, unrolled at trace
        lo, hi = b * HWp, (b + 1) * HWp
        hb = h[:, lo:hi]                            # (Ch, HWp)
        y = jnp.sum(hb * pm, axis=1, keepdims=True)                       # per-image avg pool
        t = jnp.maximum(jnp.sum(wse1 * y, axis=0, keepdims=True) + bse1, 0.0)
        g = jnp.sum(wse2 * t, axis=1, keepdims=True) + bse2
        g = jnp.clip(g + 3.0, 0.0, 6.0) * (1.0 / 6.0)                     # HardSigmoid
        ob = conv1x1(w_proj_ref, hb * g) + b3
        if apply_skip:
            ob = ob + x[:, lo:hi].astype(jnp.float32)
        o_ref[:, lo:hi] = ob.astype(o_ref.dtype)


def mobilenet_bottleneck(x_nchw, params, *, kernel_size=3, stride=1):
    N, Cin, H, W = x_nchw.shape
    Ch = params["w_exp"].shape[0]
    Cout = params["w_proj"].shape[0]
    red = params["wse1"].shape[1]
    K = kernel_size
    HW = H * W

    # TODO(synk): stride > 1 and the no-expand variant are not implemented here.
    assert stride == 1
    apply_skip = (Cin == Cout)              # module: stride == 1 and in_c == out_c and skip

    HWp = ((HW + 127) // 128) * 128         # lane-dense padding of the spatial dim
    B_blk = _pick_batch_block(N, HWp)
    L = B_blk * HWp
    grid = (N // B_blk,)

    # Tiny contractions (< 64) barely fill the MXU -> f32 VPU MAC path instead.
    use_mxu = min(Cin, Ch, Cout) >= 64
    mm_dtype = jnp.bfloat16 if use_mxu else jnp.float32

    # Host layout: (N, Cin, H, W) -> (Cin, N*HWp); batch folded onto lanes so one
    # grid step processes B_blk whole images.
    x2 = x_nchw.reshape(N, Cin, HW).transpose(1, 0, 2)       # (Cin, N, HW)
    if HWp != HW:
        x2 = jnp.pad(x2, ((0, 0), (0, 0), (0, HWp - HW)))
    x2 = x2.reshape(Cin, N * HWp)
    if use_mxu:
        x2 = x2.astype(mm_dtype)

    # Precomputed depthwise boundary masks (tiled per image) + SE pool mask.
    dwm = jnp.asarray(np.tile(_dw_boundary_masks(H, W, HWp, K), (1, B_blk)))
    pool = np.zeros((1, HWp), np.float32)
    pool[0, :HW] = 1.0 / HW
    pool = jnp.asarray(pool)

    kern = functools.partial(bottleneck_kernel, B_blk=B_blk, HWp=HWp, W=W, K=K,
                             apply_skip=apply_skip, use_mxu=use_mxu)

    out = pl.pallas_call(
        kern,
        out_shape=jax.ShapeDtypeStruct((Cout, N * HWp), jnp.float32),
        grid_spec=pltpu.PrefetchScalarGridSpec(
            num_scalar_prefetch=0,
            grid=grid,
            in_specs=[
                pl.BlockSpec((Cin, L), lambda n: (0, n)),        # x (B_blk images / step)
                pl.BlockSpec((K * K, L), lambda n: (0, 0)),      # depthwise boundary masks
                pl.BlockSpec((1, HWp), lambda n: (0, 0)),        # SE pool mask
                pl.BlockSpec((Ch, Cin), lambda n: (0, 0)),       # w_exp (BN-folded)
                pl.BlockSpec((Ch, 1), lambda n: (0, 0)),         # b1
                pl.BlockSpec((Ch, K * K), lambda n: (0, 0)),     # w_dw (BN-folded)
                pl.BlockSpec((Ch, 1), lambda n: (0, 0)),         # b2
                pl.BlockSpec((Ch, red), lambda n: (0, 0)),       # wse1 (channel-major)
                pl.BlockSpec((1, red), lambda n: (0, 0)),        # bse1
                pl.BlockSpec((Ch, red), lambda n: (0, 0)),       # wse2 (channel-major)
                pl.BlockSpec((Ch, 1), lambda n: (0, 0)),         # bse2
                pl.BlockSpec((Cout, Ch), lambda n: (0, 0)),      # w_proj (BN-folded)
                pl.BlockSpec((Cout, 1), lambda n: (0, 0)),       # b3
            ],
            out_specs=pl.BlockSpec((Cout, L), lambda n: (0, n)),
        ),
        compiler_params=pltpu.CompilerParams(
            dimension_semantics=("parallel",),   # batch-group axis; v7x megacore split
        ),
    )(x2, dwm, pool,
      params["w_exp"].astype(mm_dtype), params["b1"],
      params["w_dw"], params["b2"],
      params["wse1"], params["bse1"], params["wse2"], params["bse2"],
      params["w_proj"].astype(mm_dtype), params["b3"])

    out = out.reshape(Cout, N, HWp)[:, :, :HW]
    return out.transpose(1, 0, 2).reshape(N, Cout, H, W).astype(x_nchw.dtype)


def ref_forward(x, w_exp, s1, b1, w_dw, s2, b2, wse1, bse1, wse2, bse2,
                w_proj, s3, b3, K):
    """Pure-JAX f32 reference in PyTorch NCHW layout (same math as the module)."""
    N, Cin, H, W = x.shape
    out_c = w_proj.shape[0]
    pad = K // 2
    h = jnp.einsum("dc,nchw->ndhw", w_exp, x)
    h = jnp.clip(h * s1[None, :, None, None] + b1[None, :, None, None], 0.0, 6.0)
    hp = jnp.pad(h, ((0, 0), (0, 0), (pad, pad), (pad, pad)))
    acc = jnp.zeros_like(h)
    for dy in range(K):
        for dx in range(K):
            acc = acc + hp[:, :, dy:dy + H, dx:dx + W] * w_dw[None, :, dy, dx, None, None]
    h = jnp.clip(acc * s2[None, :, None, None] + b2[None, :, None, None], 0.0, 6.0)
    y = h.mean(axis=(2, 3))                                   # (N, Ch)
    t = jnp.maximum(y @ wse1.T + bse1[None, :], 0.0)          # (N, red)
    g = t @ wse2.T + bse2[None, :]                            # (N, Ch)
    g = jnp.clip(g + 3.0, 0.0, 6.0) / 6.0
    h = h * g[:, :, None, None]
    out = jnp.einsum("oc,nchw->nohw", w_proj, h)
    out = out * s3[None, :, None, None] + b3[None, :, None, None]
    if Cin == out_c:                                          # module skip condition
        out = out + x
    return out


if __name__ == "__main__":
    in_c, expansion, out_c, kernel_size, stride = 8, 2, 8, 3, 1
    N, H, W = 2, 16, 16
    hidden = int(round(in_c * expansion))          # 16
    red = make_divisible(hidden // 4)              # 8

    key = jax.random.PRNGKey(0)
    ks = jax.random.split(key, 24)

    def bn_params(k0, k1, k2, k3, c, eps=1e-5):
        gamma = 1.0 + 0.1 * jax.random.normal(k0, (c,), jnp.float32)
        beta = 0.1 * jax.random.normal(k1, (c,), jnp.float32)
        mean = 0.1 * jax.random.normal(k2, (c,), jnp.float32)
        var = 0.9 + 0.1 * jnp.abs(jax.random.normal(k3, (c,), jnp.float32))
        scale = gamma / jnp.sqrt(var + eps)
        bias = beta - mean * scale
        return scale, bias

    s1, b1 = bn_params(ks[0], ks[1], ks[2], ks[3], hidden)
    s2, b2 = bn_params(ks[4], ks[5], ks[6], ks[7], hidden)
    s3, b3 = bn_params(ks[8], ks[9], ks[10], ks[11], out_c)

    # Weights in PyTorch layout (1x1 conv weights squeezed to 2D).
    w_exp = 0.2 * jax.random.normal(ks[12], (hidden, in_c), jnp.float32)
    w_dw = 0.2 * jax.random.normal(ks[13], (hidden, kernel_size, kernel_size), jnp.float32)
    wse1 = 0.2 * jax.random.normal(ks[14], (red, hidden), jnp.float32)
    bse1 = 0.1 * jax.random.normal(ks[15], (red,), jnp.float32)
    wse2 = 0.2 * jax.random.normal(ks[16], (hidden, red), jnp.float32)
    bse2 = 0.1 * jax.random.normal(ks[17], (hidden,), jnp.float32)
    w_proj = 0.2 * jax.random.normal(ks[18], (out_c, hidden), jnp.float32)

    x = jax.random.normal(ks[19], (N, in_c, H, W), jnp.float32)   # PyTorch NCHW

    # Host-side prep: fold BN scales into the conv weights; keep everything f32
    # (the wrapper only casts x / 1x1 weights to bf16 when the MXU path is used).
    params = dict(
        w_exp=s1[:, None] * w_exp,                                        # (Ch, Cin)
        b1=b1.reshape(hidden, 1),
        w_dw=s2[:, None] * w_dw.reshape(hidden, kernel_size * kernel_size),
        b2=b2.reshape(hidden, 1),
        wse1=wse1.T,                                                      # (Ch, red)
        bse1=bse1.reshape(1, red),
        wse2=wse2,                                                        # (Ch, red)
        bse2=bse2.reshape(hidden, 1),
        w_proj=s3[:, None] * w_proj,                                      # (Cout, Ch)
        b3=b3.reshape(out_c, 1),
    )

    out = mobilenet_bottleneck(x, params, kernel_size=kernel_size, stride=stride)
    jax.block_until_ready(out)
    assert out.shape == (N, out_c, H, W)

    with jax.default_matmul_precision("highest"):
        ref = ref_forward(x, w_exp, s1, b1, w_dw, s2, b2, wse1, bse1, wse2, bse2,
                          w_proj, s3, b3, kernel_size)
    np.testing.assert_allclose(np.asarray(out), np.asarray(ref), atol=2e-3, rtol=2e-3)

    print("KERNEL_OK")
</pallas_src>

<mosaic_0001>
module attributes {stable_mosaic.version = 11 : i64} {
  func.func @bottleneck_kernel(%arg0: i32, %arg1: memref<8x512xf32, #tpu.memory_space<vmem>>, %arg2: memref<9x512xf32, #tpu.memory_space<vmem>>, %arg3: memref<1x256xf32, #tpu.memory_space<vmem>>, %arg4: memref<16x8xf32, #tpu.memory_space<vmem>>, %arg5: memref<16x1xf32, #tpu.memory_space<vmem>>, %arg6: memref<16x9xf32, #tpu.memory_space<vmem>>, %arg7: memref<16x1xf32, #tpu.memory_space<vmem>>, %arg8: memref<16x8xf32, #tpu.memory_space<vmem>>, %arg9: memref<1x8xf32, #tpu.memory_space<vmem>>, %arg10: memref<16x8xf32, #tpu.memory_space<vmem>>, %arg11: memref<16x1xf32, #tpu.memory_space<vmem>>, %arg12: memref<8x16xf32, #tpu.memory_space<vmem>>, %arg13: memref<8x1xf32, #tpu.memory_space<vmem>>, %arg14: memref<8x512xf32, #tpu.memory_space<vmem>>) attributes {dimension_semantics = [#tpu.dimension_semantics<parallel>], iteration_bounds = array<i64: 1>, scalar_prefetch = 0 : i64, scratch_operands = 0 : i64, tpu.core_type = #tpu.core_type<tc>, window_params = [{transform_indices = @transform_0, window_bounds = array<i64: 8, 512>}, {pipeline_mode = #tpu.pipeline_mode<synchronous>, transform_indices = @transform_1, window_bounds = array<i64: 9, 512>}, {pipeline_mode = #tpu.pipeline_mode<synchronous>, transform_indices = @transform_2, window_bounds = array<i64: 1, 256>}, {pipeline_mode = #tpu.pipeline_mode<synchronous>, transform_indices = @transform_3, window_bounds = array<i64: 16, 8>}, {pipeline_mode = #tpu.pipeline_mode<synchronous>, transform_indices = @transform_4, window_bounds = array<i64: 16, 1>}, {pipeline_mode = #tpu.pipeline_mode<synchronous>, transform_indices = @transform_5, window_bounds = array<i64: 16, 9>}, {pipeline_mode = #tpu.pipeline_mode<synchronous>, transform_indices = @transform_6, window_bounds = array<i64: 16, 1>}, {pipeline_mode = #tpu.pipeline_mode<synchronous>, transform_indices = @transform_7, window_bounds = array<i64: 16, 8>}, {pipeline_mode = #tpu.pipeline_mode<synchronous>, transform_indices = @transform_8, window_bounds = array<i64: 1, 8>}, {pipeline_mode = #tpu.pipeline_mode<synchronous>, transform_indices = @transform_9, window_bounds = array<i64: 16, 8>}, {pipeline_mode = #tpu.pipeline_mode<synchronous>, transform_indices = @transform_10, window_bounds = array<i64: 16, 1>}, {pipeline_mode = #tpu.pipeline_mode<synchronous>, transform_indices = @transform_11, window_bounds = array<i64: 8, 16>}, {pipeline_mode = #tpu.pipeline_mode<synchronous>, transform_indices = @transform_12, window_bounds = array<i64: 8, 1>}, {transform_indices = @transform_13, window_bounds = array<i64: 8, 512>}]} {
    %c0 = arith.constant 0 : index
    %c0_0 = arith.constant 0 : index
    %0 = vector.load %arg1[%c0, %c0_0] : memref<8x512xf32, #tpu.memory_space<vmem>>, vector<8x512xf32>
    %c0_1 = arith.constant 0 : index
    %c0_2 = arith.constant 0 : index
    %1 = vector.load %arg4[%c0_1, %c0_2] : memref<16x8xf32, #tpu.memory_space<vmem>>, vector<16x8xf32>
    %2 = vector.extract_strided_slice %1 {offsets = [0, 0], sizes = [16, 1], strides = [1, 1]} : vector<16x8xf32> to vector<16x1xf32>
    %3 = vector.extract_strided_slice %0 {offsets = [0, 0], sizes = [1, 512], strides = [1, 1]} : vector<8x512xf32> to vector<1x512xf32>
    %4 = vector.broadcast %2 : vector<16x1xf32> to vector<16x512xf32>
    %5 = vector.broadcast %3 : vector<1x512xf32> to vector<16x512xf32>
    %6 = arith.mulf %4, %5 : vector<16x512xf32>
    %7 = vector.extract_strided_slice %1 {offsets = [0, 1], sizes = [16, 1], strides = [1, 1]} : vector<16x8xf32> to vector<16x1xf32>
    %8 = vector.extract_strided_slice %0 {offsets = [1, 0], sizes = [1, 512], strides = [1, 1]} : vector<8x512xf32> to vector<1x512xf32>
    %9 = vector.broadcast %7 : vector<16x1xf32> to vector<16x512xf32>
    %10 = vector.broadcast %8 : vector<1x512xf32> to vector<16x512xf32>
    %11 = arith.mulf %9, %10 : vector<16x512xf32>
    %12 = arith.addf %6, %11 : vector<16x512xf32>
    %13 = vector.extract_strided_slice %1 {offsets = [0, 2], sizes = [16, 1], strides = [1, 1]} : vector<16x8xf32> to vector<16x1xf32>
    %14 = vector.extract_strided_slice %0 {offsets = [2, 0], sizes = [1, 512], strides = [1, 1]} : vector<8x512xf32> to vector<1x512xf32>
    %15 = vector.broadcast %13 : vector<16x1xf32> to vector<16x512xf32>
    %16 = vector.broadcast %14 : vector<1x512xf32> to vector<16x512xf32>
    %17 = arith.mulf %15, %16 : vector<16x512xf32>
    %18 = arith.addf %12, %17 : vector<16x512xf32>
    %19 = vector.extract_strided_slice %1 {offsets = [0, 3], sizes = [16, 1], strides = [1, 1]} : vector<16x8xf32> to vector<16x1xf32>
    %20 = vector.extract_strided_slice %0 {offsets = [3, 0], sizes = [1, 512], strides = [1, 1]} : vector<8x512xf32> to vector<1x512xf32>
    %21 = vector.broadcast %19 : vector<16x1xf32> to vector<16x512xf32>
    %22 = vector.broadcast %20 : vector<1x512xf32> to vector<16x512xf32>
    %23 = arith.mulf %21, %22 : vector<16x512xf32>
    %24 = arith.addf %18, %23 : vector<16x512xf32>
    %25 = vector.extract_strided_slice %1 {offsets = [0, 4], sizes = [16, 1], strides = [1, 1]} : vector<16x8xf32> to vector<16x1xf32>
    %26 = vector.extract_strided_slice %0 {offsets = [4, 0], sizes = [1, 512], strides = [1, 1]} : vector<8x512xf32> to vector<1x512xf32>
    %27 = vector.broadcast %25 : vector<16x1xf32> to vector<16x512xf32>
    %28 = vector.broadcast %26 : vector<1x512xf32> to vector<16x512xf32>
    %29 = arith.mulf %27, %28 : vector<16x512xf32>
    %30 = arith.addf %24, %29 : vector<16x512xf32>
    %31 = vector.extract_strided_slice %1 {offsets = [0, 5], sizes = [16, 1], strides = [1, 1]} : vector<16x8xf32> to vector<16x1xf32>
    %32 = vector.extract_strided_slice %0 {offsets = [5, 0], sizes = [1, 512], strides = [1, 1]} : vector<8x512xf32> to vector<1x512xf32>
    %33 = vector.broadcast %31 : vector<16x1xf32> to vector<16x512xf32>
    %34 = vector.broadcast %32 : vector<1x512xf32> to vector<16x512xf32>
    %35 = arith.mulf %33, %34 : vector<16x512xf32>
    %36 = arith.addf %30, %35 : vector<16x512xf32>
    %37 = vector.extract_strided_slice %1 {offsets = [0, 6], sizes = [16, 1], strides = [1, 1]} : vector<16x8xf32> to vector<16x1xf32>
    %38 = vector.extract_strided_slice %0 {offsets = [6, 0], sizes = [1, 512], strides = [1, 1]} : vector<8x512xf32> to vector<1x512xf32>
    %39 = vector.broadcast %37 : vector<16x1xf32> to vector<16x512xf32>
    %40 = vector.broadcast %38 : vector<1x512xf32> to vector<16x512xf32>
    %41 = arith.mulf %39, %40 : vector<16x512xf32>
    %42 = arith.addf %36, %41 : vector<16x512xf32>
    %43 = vector.extract_strided_slice %1 {offsets = [0, 7], sizes = [16, 1], strides = [1, 1]} : vector<16x8xf32> to vector<16x1xf32>
    %44 = vector.extract_strided_slice %0 {offsets = [7, 0], sizes = [1, 512], strides = [1, 1]} : vector<8x512xf32> to vector<1x512xf32>
    %45 = vector.broadcast %43 : vector<16x1xf32> to vector<16x512xf32>
    %46 = vector.broadcast %44 : vector<1x512xf32> to vector<16x512xf32>
    %47 = arith.mulf %45, %46 : vector<16x512xf32>
    %48 = arith.addf %42, %47 : vector<16x512xf32>
    %c0_3 = arith.constant 0 : index
    %c0_4 = arith.constant 0 : index
    %49 = vector.load %arg5[%c0_3, %c0_4] : memref<16x1xf32, #tpu.memory_space<vmem>>, vector<16x1xf32>
    %50 = vector.broadcast %49 : vector<16x1xf32> to vector<16x512xf32>
    %51 = arith.addf %48, %50 : vector<16x512xf32>
    %cst = arith.constant 0.000000e+00 : f32
    %cst_5 = arith.constant 6.000000e+00 : f32
    %52 = vector.broadcast %cst : f32 to vector<16x512xf32>
    %53 = arith.maximumf %52, %51 : vector<16x512xf32>
    %54 = vector.broadcast %cst_5 : f32 to vector<16x512xf32>
    %55 = arith.minimumf %54, %53 : vector<16x512xf32>
    %c0_6 = arith.constant 0 : index
    %c0_7 = arith.constant 0 : index
    %56 = vector.load %arg6[%c0_6, %c0_7] : memref<16x9xf32, #tpu.memory_space<vmem>>, vector<16x9xf32>
    %c0_8 = arith.constant 0 : index
    %c0_9 = arith.constant 0 : index
    %57 = vector.load %arg2[%c0_8, %c0_9] : memref<9x512xf32, #tpu.memory_space<vmem>>, vector<9x512xf32>
    %c17_i32 = arith.constant 17 : i32
    %58 = tpu.dynamic_rotate %55 by %c17_i32 dim 1 : vector<16x512xf32>, i32 -> vector<16x512xf32>
    %59 = vector.extract_strided_slice %56 {offsets = [0, 0], sizes = [16, 1], strides = [1, 1]} : vector<16x9xf32> to vector<16x1xf32>
    %60 = vector.extract_strided_slice %57 {offsets = [0, 0], sizes = [1, 512], strides = [1, 1]} : vector<9x512xf32> to vector<1x512xf32>
    %61 = vector.broadcast %59 : vector<16x1xf32> to vector<16x512xf32>
    %62 = vector.broadcast %60 : vector<1x512xf32> to vector<16x512xf32>
    %63 = arith.mulf %61, %62 : vector<16x512xf32>
    %64 = arith.mulf %58, %63 : vector<16x512xf32>
    %c16_i32 = arith.constant 16 : i32
    %65 = tpu.dynamic_rotate %55 by %c16_i32 dim 1 : vector<16x512xf32>, i32 -> vector<16x512xf32>
    %66 = vector.extract_strided_slice %56 {offsets = [0, 1], sizes = [16, 1], strides = [1, 1]} : vector<16x9xf32> to vector<16x1xf32>
    %67 = vector.extract_strided_slice %57 {offsets = [1, 0], sizes = [1, 512], strides = [1, 1]} : vector<9x512xf32> to vector<1x512xf32>
    %68 = vector.broadcast %66 : vector<16x1xf32> to vector<16x512xf32>
    %69 = vector.broadcast %67 : vector<1x512xf32> to vector<16x512xf32>
    %70 = arith.mulf %68, %69 : vector<16x512xf32>
    %71 = arith.mulf %65, %70 : vector<16x512xf32>
    %72 = arith.addf %64, %71 : vector<16x512xf32>
    %c15_i32 = arith.constant 15 : i32
    %73 = tpu.dynamic_rotate %55 by %c15_i32 dim 1 : vector<16x512xf32>, i32 -> vector<16x512xf32>
    %74 = vector.extract_strided_slice %56 {offsets = [0, 2], sizes = [16, 1], strides = [1, 1]} : vector<16x9xf32> to vector<16x1xf32>
    %75 = vector.extract_strided_slice %57 {offsets = [2, 0], sizes = [1, 512], strides = [1, 1]} : vector<9x512xf32> to vector<1x512xf32>
    %76 = vector.broadcast %74 : vector<16x1xf32> to vector<16x512xf32>
    %77 = vector.broadcast %75 : vector<1x512xf32> to vector<16x512xf32>
    %78 = arith.mulf %76, %77 : vector<16x512xf32>
    %79 = arith.mulf %73, %78 : vector<16x512xf32>
    %80 = arith.addf %72, %79 : vector<16x512xf32>
    %c1_i32 = arith.constant 1 : i32
    %81 = tpu.dynamic_rotate %55 by %c1_i32 dim 1 : vector<16x512xf32>, i32 -> vector<16x512xf32>
    %82 = vector.extract_strided_slice %56 {offsets = [0, 3], sizes = [16, 1], strides = [1, 1]} : vector<16x9xf32> to vector<16x1xf32>
    %83 = vector.extract_strided_slice %57 {offsets = [3, 0], sizes = [1, 512], strides = [1, 1]} : vector<9x512xf32> to vector<1x512xf32>
    %84 = vector.broadcast %82 : vector<16x1xf32> to vector<16x512xf32>
    %85 = vector.broadcast %83 : vector<1x512xf32> to vector<16x512xf32>
    %86 = arith.mulf %84, %85 : vector<16x512xf32>
    %87 = arith.mulf %81, %86 : vector<16x512xf32>
    %88 = arith.addf %80, %87 : vector<16x512xf32>
    %89 = vector.extract_strided_slice %56 {offsets = [0, 4], sizes = [16, 1], strides = [1, 1]} : vector<16x9xf32> to vector<16x1xf32>
    %90 = vector.extract_strided_slice %57 {offsets = [4, 0], sizes = [1, 512], strides = [1, 1]} : vector<9x512xf32> to vector<1x512xf32>
    %91 = vector.broadcast %89 : vector<16x1xf32> to vector<16x512xf32>
    %92 = vector.broadcast %90 : vector<1x512xf32> to vector<16x512xf32>
    %93 = arith.mulf %91, %92 : vector<16x512xf32>
    %94 = arith.mulf %55, %93 : vector<16x512xf32>
    %95 = arith.addf %88, %94 : vector<16x512xf32>
    %c511_i32 = arith.constant 511 : i32
    %96 = tpu.dynamic_rotate %55 by %c511_i32 dim 1 : vector<16x512xf32>, i32 -> vector<16x512xf32>
    %97 = vector.extract_strided_slice %56 {offsets = [0, 5], sizes = [16, 1], strides = [1, 1]} : vector<16x9xf32> to vector<16x1xf32>
    %98 = vector.extract_strided_slice %57 {offsets = [5, 0], sizes = [1, 512], strides = [1, 1]} : vector<9x512xf32> to vector<1x512xf32>
    %99 = vector.broadcast %97 : vector<16x1xf32> to vector<16x512xf32>
    %100 = vector.broadcast %98 : vector<1x512xf32> to vector<16x512xf32>
    %101 = arith.mulf %99, %100 : vector<16x512xf32>
    %102 = arith.mulf %96, %101 : vector<16x512xf32>
    %103 = arith.addf %95, %102 : vector<16x512xf32>
    %c497_i32 = arith.constant 497 : i32
    %104 = tpu.dynamic_rotate %55 by %c497_i32 dim 1 : vector<16x512xf32>, i32 -> vector<16x512xf32>
    %105 = vector.extract_strided_slice %56 {offsets = [0, 6], sizes = [16, 1], strides = [1, 1]} : vector<16x9xf32> to vector<16x1xf32>
    %106 = vector.extract_strided_slice %57 {offsets = [6, 0], sizes = [1, 512], strides = [1, 1]} : vector<9x512xf32> to vector<1x512xf32>
    %107 = vector.broadcast %105 : vector<16x1xf32> to vector<16x512xf32>
    %108 = vector.broadcast %106 : vector<1x512xf32> to vector<16x512xf32>
    %109 = arith.mulf %107, %108 : vector<16x512xf32>
    %110 = arith.mulf %104, %109 : vector<16x512xf32>
    %111 = arith.addf %103, %110 : vector<16x512xf32>
    %c496_i32 = arith.constant 496 : i32
    %112 = tpu.dynamic_rotate %55 by %c496_i32 dim 1 : vector<16x512xf32>, i32 -> vector<16x512xf32>
    %113 = vector.extract_strided_slice %56 {offsets = [0, 7], sizes = [16, 1], strides = [1, 1]} : vector<16x9xf32> to vector<16x1xf32>
    %114 = vector.extract_strided_slice %57 {offsets = [7, 0], sizes = [1, 512], strides = [1, 1]} : vector<9x512xf32> to vector<1x512xf32>
    %115 = vector.broadcast %113 : vector<16x1xf32> to vector<16x512xf32>
    %116 = vector.broadcast %114 : vector<1x512xf32> to vector<16x512xf32>
    %117 = arith.mulf %115, %116 : vector<16x512xf32>
    %118 = arith.mulf %112, %117 : vector<16x512xf32>
    %119 = arith.addf %111, %118 : vector<16x512xf32>
    %c495_i32 = arith.constant 495 : i32
    %120 = tpu.dynamic_rotate %55 by %c495_i32 dim 1 : vector<16x512xf32>, i32 -> vector<16x512xf32>
    %121 = vector.extract_strided_slice %56 {offsets = [0, 8], sizes = [16, 1], strides = [1, 1]} : vector<16x9xf32> to vector<16x1xf32>
    %122 = vector.extract_strided_slice %57 {offsets = [8, 0], sizes = [1, 512], strides = [1, 1]} : vector<9x512xf32> to vector<1x512xf32>
    %123 = vector.broadcast %121 : vector<16x1xf32> to vector<16x512xf32>
    %124 = vector.broadcast %122 : vector<1x512xf32> to vector<16x512xf32>
    %125 = arith.mulf %123, %124 : vector<16x512xf32>
    %126 = arith.mulf %120, %125 : vector<16x512xf32>
    %127 = arith.addf %119, %126 : vector<16x512xf32>
    %c0_10 = arith.constant 0 : index
    %c0_11 = arith.constant 0 : index
    %128 = vector.load %arg7[%c0_10, %c0_11] : memref<16x1xf32, #tpu.memory_space<vmem>>, vector<16x1xf32>
    %129 = vector.broadcast %128 : vector<16x1xf32> to vector<16x512xf32>
    %130 = arith.addf %127, %129 : vector<16x512xf32>
    %cst_12 = arith.constant 0.000000e+00 : f32
    %cst_13 = arith.constant 6.000000e+00 : f32
    %131 = vector.broadcast %cst_12 : f32 to vector<16x512xf32>
    %132 = arith.maximumf %131, %130 : vector<16x512xf32>
    %133 = vector.broadcast %cst_13 : f32 to vector<16x512xf32>
    %134 = arith.minimumf %133, %132 : vector<16x512xf32>
    %c0_14 = arith.constant 0 : index
    %c0_15 = arith.constant 0 : index
    %135 = vector.load %arg3[%c0_14, %c0_15] : memref<1x256xf32, #tpu.memory_space<vmem>>, vector<1x256xf32>
    %c0_16 = arith.constant 0 : index
    %c0_17 = arith.constant 0 : index
    %136 = vector.load %arg8[%c0_16, %c0_17] : memref<16x8xf32, #tpu.memory_space<vmem>>, vector<16x8xf32>
    %c0_18 = arith.constant 0 : index
    %c0_19 = arith.constant 0 : index
    %137 = vector.load %arg9[%c0_18, %c0_19] : memref<1x8xf32, #tpu.memory_space<vmem>>, vector<1x8xf32>
    %c0_20 = arith.constant 0 : index
    %c0_21 = arith.constant 0 : index
    %138 = vector.load %arg10[%c0_20, %c0_21] : memref<16x8xf32, #tpu.memory_space<vmem>>, vector<16x8xf32>
    %c0_22 = arith.constant 0 : index
    %c0_23 = arith.constant 0 : index
    %139 = vector.load %arg11[%c0_22, %c0_23] : memref<16x1xf32, #tpu.memory_space<vmem>>, vector<16x1xf32>
    %c0_24 = arith.constant 0 : index
    %c0_25 = arith.constant 0 : index
    %140 = vector.load %arg13[%c0_24, %c0_25] : memref<8x1xf32, #tpu.memory_space<vmem>>, vector<8x1xf32>
    %141 = vector.extract_strided_slice %134 {offsets = [0, 0], sizes = [16, 256], strides = [1, 1]} : vector<16x512xf32> to vector<16x256xf32>
    %142 = vector.broadcast %135 : vector<1x256xf32> to vector<16x256xf32>
    %143 = arith.mulf %141, %142 : vector<16x256xf32>
    %cst_26 = arith.constant dense<0.000000e+00> : vector<16xf32>
    %144 = vector.multi_reduction <add>, %143, %cst_26 [1] : vector<16x256xf32> to vector<16xf32>
    %145 = vector.shape_cast %144 : vector<16xf32> to vector<16x1xf32>
    %146 = vector.broadcast %145 : vector<16x1xf32> to vector<16x8xf32>
    %147 = arith.mulf %136, %146 : vector<16x8xf32>
    %cst_27 = arith.constant dense<0.000000e+00> : vector<8xf32>
    %148 = vector.multi_reduction <add>, %147, %cst_27 [0] : vector<16x8xf32> to vector<8xf32>
    %149 = vector.shape_cast %148 : vector<8xf32> to vector<1x8xf32>
    %150 = arith.addf %149, %137 : vector<1x8xf32>
    %cst_28 = arith.constant 0.000000e+00 : f32
    %151 = vector.broadcast %cst_28 : f32 to vector<1x8xf32>
    %152 = arith.maximumf %150, %151 : vector<1x8xf32>
    %153 = vector.broadcast %152 : vector<1x8xf32> to vector<16x8xf32>
    %154 = arith.mulf %138, %153 : vector<16x8xf32>
    %cst_29 = arith.constant dense<0.000000e+00> : vector<16xf32>
    %155 = vector.multi_reduction <add>, %154, %cst_29 [1] : vector<16x8xf32> to vector<16xf32>
    %156 = vector.shape_cast %155 : vector<16xf32> to vector<16x1xf32>
    %157 = arith.addf %156, %139 : vector<16x1xf32>
    %cst_30 = arith.constant 3.000000e+00 : f32
    %158 = vector.broadcast %cst_30 : f32 to vector<16x1xf32>
    %159 = arith.addf %157, %158 : vector<16x1xf32>
    %cst_31 = arith.constant 0.000000e+00 : f32
    %cst_32 = arith.constant 6.000000e+00 : f32
    %160 = vector.broadcast %cst_31 : f32 to vector<16x1xf32>
    %161 = arith.maximumf %160, %159 : vector<16x1xf32>
    %162 = vector.broadcast %cst_32 : f32 to vector<16x1xf32>
    %163 = arith.minimumf %162, %161 : vector<16x1xf32>
    %cst_33 = arith.constant 0.166666672 : f32
    %164 = vector.broadcast %cst_33 : f32 to vector<16x1xf32>
    %165 = arith.mulf %163, %164 : vector<16x1xf32>
    %166 = vector.broadcast %165 : vector<16x1xf32> to vector<16x256xf32>
    %167 = arith.mulf %141, %166 : vector<16x256xf32>
    %c0_34 = arith.constant 0 : index
    %c0_35 = arith.constant 0 : index
    %168 = vector.load %arg12[%c0_34, %c0_35] : memref<8x16xf32, #tpu.memory_space<vmem>>, vector<8x16xf32>
    %169 = vector.extract_strided_slice %168 {offsets = [0, 0], sizes = [8, 1], strides = [1, 1]} : vector<8x16xf32> to vector<8x1xf32>
    %170 = vector.extract_strided_slice %167 {offsets = [0, 0], sizes = [1, 256], strides = [1, 1]} : vector<16x256xf32> to vector<1x256xf32>
    %171 = vector.broadcast %169 : vector<8x1xf32> to vector<8x256xf32>
    %172 = vector.broadcast %170 : vector<1x256xf32> to vector<8x256xf32>
    %173 = arith.mulf %171, %172 : vector<8x256xf32>
    %174 = vector.extract_strided_slice %168 {offsets = [0, 1], sizes = [8, 1], strides = [1, 1]} : vector<8x16xf32> to vector<8x1xf32>
    %175 = vector.extract_strided_slice %167 {offsets = [1, 0], sizes = [1, 256], strides = [1, 1]} : vector<16x256xf32> to vector<1x256xf32>
    %176 = vector.broadcast %174 : vector<8x1xf32> to vector<8x256xf32>
    %177 = vector.broadcast %175 : vector<1x256xf32> to vector<8x256xf32>
    %178 = arith.mulf %176, %177 : vector<8x256xf32>
    %179 = arith.addf %173, %178 : vector<8x256xf32>
    %180 = vector.extract_strided_slice %168 {offsets = [0, 2], sizes = [8, 1], strides = [1, 1]} : vector<8x16xf32> to vector<8x1xf32>
    %181 = vector.extract_strided_slice %167 {offsets = [2, 0], sizes = [1, 256], strides = [1, 1]} : vector<16x256xf32> to vector<1x256xf32>
    %182 = vector.broadcast %180 : vector<8x1xf32> to vector<8x256xf32>
    %183 = vector.broadcast %181 : vector<1x256xf32> to vector<8x256xf32>
    %184 = arith.mulf %182, %183 : vector<8x256xf32>
    %185 = arith.addf %179, %184 : vector<8x256xf32>
    %186 = vector.extract_strided_slice %168 {offsets = [0, 3], sizes = [8, 1], strides = [1, 1]} : vector<8x16xf32> to vector<8x1xf32>
    %187 = vector.extract_strided_slice %167 {offsets = [3, 0], sizes = [1, 256], strides = [1, 1]} : vector<16x256xf32> to vector<1x256xf32>
    %188 = vector.broadcast %186 : vector<8x1xf32> to vector<8x256xf32>
    %189 = vector.broadcast %187 : vector<1x256xf32> to vector<8x256xf32>
    %190 = arith.mulf %188, %189 : vector<8x256xf32>
    %191 = arith.addf %185, %190 : vector<8x256xf32>
    %192 = vector.extract_strided_slice %168 {offsets = [0, 4], sizes = [8, 1], strides = [1, 1]} : vector<8x16xf32> to vector<8x1xf32>
    %193 = vector.extract_strided_slice %167 {offsets = [4, 0], sizes = [1, 256], strides = [1, 1]} : vector<16x256xf32> to vector<1x256xf32>
    %194 = vector.broadcast %192 : vector<8x1xf32> to vector<8x256xf32>
    %195 = vector.broadcast %193 : vector<1x256xf32> to vector<8x256xf32>
    %196 = arith.mulf %194, %195 : vector<8x256xf32>
    %197 = arith.addf %191, %196 : vector<8x256xf32>
    %198 = vector.extract_strided_slice %168 {offsets = [0, 5], sizes = [8, 1], strides = [1, 1]} : vector<8x16xf32> to vector<8x1xf32>
    %199 = vector.extract_strided_slice %167 {offsets = [5, 0], sizes = [1, 256], strides = [1, 1]} : vector<16x256xf32> to vector<1x256xf32>
    %200 = vector.broadcast %198 : vector<8x1xf32> to vector<8x256xf32>
    %201 = vector.broadcast %199 : vector<1x256xf32> to vector<8x256xf32>
    %202 = arith.mulf %200, %201 : vector<8x256xf32>
    %203 = arith.addf %197, %202 : vector<8x256xf32>
    %204 = vector.extract_strided_slice %168 {offsets = [0, 6], sizes = [8, 1], strides = [1, 1]} : vector<8x16xf32> to vector<8x1xf32>
    %205 = vector.extract_strided_slice %167 {offsets = [6, 0], sizes = [1, 256], strides = [1, 1]} : vector<16x256xf32> to vector<1x256xf32>
    %206 = vector.broadcast %204 : vector<8x1xf32> to vector<8x256xf32>
    %207 = vector.broadcast %205 : vector<1x256xf32> to vector<8x256xf32>
    %208 = arith.mulf %206, %207 : vector<8x256xf32>
    %209 = arith.addf %203, %208 : vector<8x256xf32>
    %210 = vector.extract_strided_slice %168 {offsets = [0, 7], sizes = [8, 1], strides = [1, 1]} : vector<8x16xf32> to vector<8x1xf32>
    %211 = vector.extract_strided_slice %167 {offsets = [7, 0], sizes = [1, 256], strides = [1, 1]} : vector<16x256xf32> to vector<1x256xf32>
    %212 = vector.broadcast %210 : vector<8x1xf32> to vector<8x256xf32>
    %213 = vector.broadcast %211 : vector<1x256xf32> to vector<8x256xf32>
    %214 = arith.mulf %212, %213 : vector<8x256xf32>
    %215 = arith.addf %209, %214 : vector<8x256xf32>
    %216 = vector.extract_strided_slice %168 {offsets = [0, 8], sizes = [8, 1], strides = [1, 1]} : vector<8x16xf32> to vector<8x1xf32>
    %217 = vector.extract_strided_slice %167 {offsets = [8, 0], sizes = [1, 256], strides = [1, 1]} : vector<16x256xf32> to vector<1x256xf32>
    %218 = vector.broadcast %216 : vector<8x1xf32> to vector<8x256xf32>
    %219 = vector.broadcast %217 : vector<1x256xf32> to vector<8x256xf32>
    %220 = arith.mulf %218, %219 : vector<8x256xf32>
    %221 = arith.addf %215, %220 : vector<8x256xf32>
    %222 = vector.extract_strided_slice %168 {offsets = [0, 9], sizes = [8, 1], strides = [1, 1]} : vector<8x16xf32> to vector<8x1xf32>
    %223 = vector.extract_strided_slice %167 {offsets = [9, 0], sizes = [1, 256], strides = [1, 1]} : vector<16x256xf32> to vector<1x256xf32>
    %224 = vector.broadcast %222 : vector<8x1xf32> to vector<8x256xf32>
    %225 = vector.broadcast %223 : vector<1x256xf32> to vector<8x256xf32>
    %226 = arith.mulf %224, %225 : vector<8x256xf32>
    %227 = arith.addf %221, %226 : vector<8x256xf32>
    %228 = vector.extract_strided_slice %168 {offsets = [0, 10], sizes = [8, 1], strides = [1, 1]} : vector<8x16xf32> to vector<8x1xf32>
    %229 = vector.extract_strided_slice %167 {offsets = [10, 0], sizes = [1, 256], strides = [1, 1]} : vector<16x256xf32> to vector<1x256xf32>
    %230 = vector.broadcast %228 : vector<8x1xf32> to vector<8x256xf32>
    %231 = vector.broadcast %229 : vector<1x256xf32> to vector<8x256xf32>
    %232 = arith.mulf %230, %231 : vector<8x256xf32>
    %233 = arith.addf %227, %232 : vector<8x256xf32>
    %234 = vector.extract_strided_slice %168 {offsets = [0, 11], sizes = [8, 1], strides = [1, 1]} : vector<8x16xf32> to vector<8x1xf32>
    %235 = vector.extract_strided_slice %167 {offsets = [11, 0], sizes = [1, 256], strides = [1, 1]} : vector<16x256xf32> to vector<1x256xf32>
    %236 = vector.broadcast %234 : vector<8x1xf32> to vector<8x256xf32>
    %237 = vector.broadcast %235 : vector<1x256xf32> to vector<8x256xf32>
    %238 = arith.mulf %236, %237 : vector<8x256xf32>
    %239 = arith.addf %233, %238 : vector<8x256xf32>
    %240 = vector.extract_strided_slice %168 {offsets = [0, 12], sizes = [8, 1], strides = [1, 1]} : vector<8x16xf32> to vector<8x1xf32>
    %241 = vector.extract_strided_slice %167 {offsets = [12, 0], sizes = [1, 256], strides = [1, 1]} : vector<16x256xf32> to vector<1x256xf32>
    %242 = vector.broadcast %240 : vector<8x1xf32> to vector<8x256xf32>
    %243 = vector.broadcast %241 : vector<1x256xf32> to vector<8x256xf32>
    %244 = arith.mulf %242, %243 : vector<8x256xf32>
    %245 = arith.addf %239, %244 : vector<8x256xf32>
    %246 = vector.extract_strided_slice %168 {offsets = [0, 13], sizes = [8, 1], strides = [1, 1]} : vector<8x16xf32> to vector<8x1xf32>
    %247 = vector.extract_strided_slice %167 {offsets = [13, 0], sizes = [1, 256], strides = [1, 1]} : vector<16x256xf32> to vector<1x256xf32>
    %248 = vector.broadcast %246 : vector<8x1xf32> to vector<8x256xf32>
    %249 = vector.broadcast %247 : vector<1x256xf32> to vector<8x256xf32>
    %250 = arith.mulf %248, %249 : vector<8x256xf32>
    %251 = arith.addf %245, %250 : vector<8x256xf32>
    %252 = vector.extract_strided_slice %168 {offsets = [0, 14], sizes = [8, 1], strides = [1, 1]} : vector<8x16xf32> to vector<8x1xf32>
    %253 = vector.extract_strided_slice %167 {offsets = [14, 0], sizes = [1, 256], strides = [1, 1]} : vector<16x256xf32> to vector<1x256xf32>
    %254 = vector.broadcast %252 : vector<8x1xf32> to vector<8x256xf32>
    %255 = vector.broadcast %253 : vector<1x256xf32> to vector<8x256xf32>
    %256 = arith.mulf %254, %255 : vector<8x256xf32>
    %257 = arith.addf %251, %256 : vector<8x256xf32>
    %258 = vector.extract_strided_slice %168 {offsets = [0, 15], sizes = [8, 1], strides = [1, 1]} : vector<8x16xf32> to vector<8x1xf32>
    %259 = vector.extract_strided_slice %167 {offsets = [15, 0], sizes = [1, 256], strides = [1, 1]} : vector<16x256xf32> to vector<1x256xf32>
    %260 = vector.broadcast %258 : vector<8x1xf32> to vector<8x256xf32>
    %261 = vector.broadcast %259 : vector<1x256xf32> to vector<8x256xf32>
    %262 = arith.mulf %260, %261 : vector<8x256xf32>
    %263 = arith.addf %257, %262 : vector<8x256xf32>
    %264 = vector.broadcast %140 : vector<8x1xf32> to vector<8x256xf32>
    %265 = arith.addf %263, %264 : vector<8x256xf32>
    %266 = vector.extract_strided_slice %0 {offsets = [0, 0], sizes = [8, 256], strides = [1, 1]} : vector<8x512xf32> to vector<8x256xf32>
    %267 = arith.addf %265, %266 : vector<8x256xf32>
    %c0_36 = arith.constant 0 : index
    %c0_37 = arith.constant 0 : index
    %268 = vector.load %arg14[%c0_36, %c0_37] : memref<8x512xf32, #tpu.memory_space<vmem>>, vector<8x256xf32>
    tpu.vector_store %arg14[%c0_36, %c0_37], %267 {strides = array<i32>} : memref<8x512xf32, #tpu.memory_space<vmem>>, vector<8x256xf32>,
    %269 = vector.extract_strided_slice %134 {offsets = [0, 256], sizes = [16, 256], strides = [1, 1]} : vector<16x512xf32> to vector<16x256xf32>
    %270 = vector.broadcast %135 : vector<1x256xf32> to vector<16x256xf32>
    %271 = arith.mulf %269, %270 : vector<16x256xf32>
    %cst_38 = arith.constant dense<0.000000e+00> : vector<16xf32>
    %272 = vector.multi_reduction <add>, %271, %cst_38 [1] : vector<16x256xf32> to vector<16xf32>
    %273 = vector.shape_cast %272 : vector<16xf32> to vector<16x1xf32>
    %274 = vector.broadcast %273 : vector<16x1xf32> to vector<16x8xf32>
    %275 = arith.mulf %136, %274 : vector<16x8xf32>
    %cst_39 = arith.constant dense<0.000000e+00> : vector<8xf32>
    %276 = vector.multi_reduction <add>, %275, %cst_39 [0] : vector<16x8xf32> to vector<8xf32>
    %277 = vector.shape_cast %276 : vector<8xf32> to vector<1x8xf32>
    %278 = arith.addf %277, %137 : vector<1x8xf32>
    %cst_40 = arith.constant 0.000000e+00 : f32
    %279 = vector.broadcast %cst_40 : f32 to vector<1x8xf32>
    %280 = arith.maximumf %278, %279 : vector<1x8xf32>
    %281 = vector.broadcast %280 : vector<1x8xf32> to vector<16x8xf32>
    %282 = arith.mulf %138, %281 : vector<16x8xf32>
    %cst_41 = arith.constant dense<0.000000e+00> : vector<16xf32>
    %283 = vector.multi_reduction <add>, %282, %cst_41 [1] : vector<16x8xf32> to vector<16xf32>
    %284 = vector.shape_cast %283 : vector<16xf32> to vector<16x1xf32>
    %285 = arith.addf %284, %139 : vector<16x1xf32>
    %cst_42 = arith.constant 3.000000e+00 : f32
    %286 = vector.broadcast %cst_42 : f32 to vector<16x1xf32>
    %287 = arith.addf %285, %286 : vector<16x1xf32>
    %cst_43 = arith.constant 0.000000e+00 : f32
    %cst_44 = arith.constant 6.000000e+00 : f32
    %288 = vector.broadcast %cst_43 : f32 to vector<16x1xf32>
    %289 = arith.maximumf %288, %287 : vector<16x1xf32>
    %290 = vector.broadcast %cst_44 : f32 to vector<16x1xf32>
    %291 = arith.minimumf %290, %289 : vector<16x1xf32>
    %cst_45 = arith.constant 0.166666672 : f32
    %292 = vector.broadcast %cst_45 : f32 to vector<16x1xf32>
    %293 = arith.mulf %291, %292 : vector<16x1xf32>
    %294 = vector.broadcast %293 : vector<16x1xf32> to vector<16x256xf32>
    %295 = arith.mulf %269, %294 : vector<16x256xf32>
    %c0_46 = arith.constant 0 : index
    %c0_47 = arith.constant 0 : index
    %296 = vector.load %arg12[%c0_46, %c0_47] : memref<8x16xf32, #tpu.memory_space<vmem>>, vector<8x16xf32>
    %297 = vector.extract_strided_slice %296 {offsets = [0, 0], sizes = [8, 1], strides = [1, 1]} : vector<8x16xf32> to vector<8x1xf32>
    %298 = vector.extract_strided_slice %295 {offsets = [0, 0], sizes = [1, 256], strides = [1, 1]} : vector<16x256xf32> to vector<1x256xf32>
    %299 = vector.broadcast %297 : vector<8x1xf32> to vector<8x256xf32>
    %300 = vector.broadcast %298 : vector<1x256xf32> to vector<8x256xf32>
    %301 = arith.mulf %299, %300 : vector<8x256xf32>
    %302 = vector.extract_strided_slice %296 {offsets = [0, 1], sizes = [8, 1], strides = [1, 1]} : vector<8x16xf32> to vector<8x1xf32>
    %303 = vector.extract_strided_slice %295 {offsets = [1, 0], sizes = [1, 256], strides = [1, 1]} : vector<16x256xf32> to vector<1x256xf32>
    %304 = vector.broadcast %302 : vector<8x1xf32> to vector<8x256xf32>
    %305 = vector.broadcast %303 : vector<1x256xf32> to vector<8x256xf32>
    %306 = arith.mulf %304, %305 : vector<8x256xf32>
    %307 = arith.addf %301, %306 : vector<8x256xf32>
    %308 = vector.extract_strided_slice %296 {offsets = [0, 2], sizes = [8, 1], strides = [1, 1]} : vector<8x16xf32> to vector<8x1xf32>
    %309 = vector.extract_strided_slice %295 {offsets = [2, 0], sizes = [1, 256], strides = [1, 1]} : vector<16x256xf32> to vector<1x256xf32>
    %310 = vector.broadcast %308 : vector<8x1xf32> to vector<8x256xf32>
    %311 = vector.broadcast %309 : vector<1x256xf32> to vector<8x256xf32>
    %312 = arith.mulf %310, %311 : vector<8x256xf32>
    %313 = arith.addf %307, %312 : vector<8x256xf32>
    %314 = vector.extract_strided_slice %296 {offsets = [0, 3], sizes = [8, 1], strides = [1, 1]} : vector<8x16xf32> to vector<8x1xf32>
    %315 = vector.extract_strided_slice %295 {offsets = [3, 0], sizes = [1, 256], strides = [1, 1]} : vector<16x256xf32> to vector<1x256xf32>
    %316 = vector.broadcast %314 : vector<8x1xf32> to vector<8x256xf32>
    %317 = vector.broadcast %315 : vector<1x256xf32> to vector<8x256xf32>
    %318 = arith.mulf %316, %317 : vector<8x256xf32>
    %319 = arith.addf %313, %318 : vector<8x256xf32>
    %320 = vector.extract_strided_slice %296 {offsets = [0, 4], sizes = [8, 1], strides = [1, 1]} : vector<8x16xf32> to vector<8x1xf32>
    %321 = vector.extract_strided_slice %295 {offsets = [4, 0], sizes = [1, 256], strides = [1, 1]} : vector<16x256xf32> to vector<1x256xf32>
    %322 = vector.broadcast %320 : vector<8x1xf32> to vector<8x256xf32>
    %323 = vector.broadcast %321 : vector<1x256xf32> to vector<8x256xf32>
    %324 = arith.mulf %322, %323 : vector<8x256xf32>
    %325 = arith.addf %319, %324 : vector<8x256xf32>
    %326 = vector.extract_strided_slice %296 {offsets = [0, 5], sizes = [8, 1], strides = [1, 1]} : vector<8x16xf32> to vector<8x1xf32>
    %327 = vector.extract_strided_slice %295 {offsets = [5, 0], sizes = [1, 256], strides = [1, 1]} : vector<16x256xf32> to vector<1x256xf32>
    %328 = vector.broadcast %326 : vector<8x1xf32> to vector<8x256xf32>
    %329 = vector.broadcast %327 : vector<1x256xf32> to vector<8x256xf32>
    %330 = arith.mulf %328, %329 : vector<8x256xf32>
    %331 = arith.addf %325, %330 : vector<8x256xf32>
    %332 = vector.extract_strided_slice %296 {offsets = [0, 6], sizes = [8, 1], strides = [1, 1]} : vector<8x16xf32> to vector<8x1xf32>
    %333 = vector.extract_strided_slice %295 {offsets = [6, 0], sizes = [1, 256], strides = [1, 1]} : vector<16x256xf32> to vector<1x256xf32>
    %334 = vector.broadcast %332 : vector<8x1xf32> to vector<8x256xf32>
    %335 = vector.broadcast %333 : vector<1x256xf32> to vector<8x256xf32>
    %336 = arith.mulf %334, %335 : vector<8x256xf32>
    %337 = arith.addf %331, %336 : vector<8x256xf32>
    %338 = vector.extract_strided_slice %296 {offsets = [0, 7], sizes = [8, 1], strides = [1, 1]} : vector<8x16xf32> to vector<8x1xf32>
    %339 = vector.extract_strided_slice %295 {offsets = [7, 0], sizes = [1, 256], strides = [1, 1]} : vector<16x256xf32> to vector<1x256xf32>
    %340 = vector.broadcast %338 : vector<8x1xf32> to vector<8x256xf32>
    %341 = vector.broadcast %339 : vector<1x256xf32> to vector<8x256xf32>
    %342 = arith.mulf %340, %341 : vector<8x256xf32>
    %343 = arith.addf %337, %342 : vector<8x256xf32>
    %344 = vector.extract_strided_slice %296 {offsets = [0, 8], sizes = [8, 1], strides = [1, 1]} : vector<8x16xf32> to vector<8x1xf32>
    %345 = vector.extract_strided_slice %295 {offsets = [8, 0], sizes = [1, 256], strides = [1, 1]} : vector<16x256xf32> to vector<1x256xf32>
    %346 = vector.broadcast %344 : vector<8x1xf32> to vector<8x256xf32>
    %347 = vector.broadcast %345 : vector<1x256xf32> to vector<8x256xf32>
    %348 = arith.mulf %346, %347 : vector<8x256xf32>
    %349 = arith.addf %343, %348 : vector<8x256xf32>
    %350 = vector.extract_strided_slice %296 {offsets = [0, 9], sizes = [8, 1], strides = [1, 1]} : vector<8x16xf32> to vector<8x1xf32>
    %351 = vector.extract_strided_slice %295 {offsets = [9, 0], sizes = [1, 256], strides = [1, 1]} : vector<16x256xf32> to vector<1x256xf32>
    %352 = vector.broadcast %350 : vector<8x1xf32> to vector<8x256xf32>
    %353 = vector.broadcast %351 : vector<1x256xf32> to vector<8x256xf32>
    %354 = arith.mulf %352, %353 : vector<8x256xf32>
    %355 = arith.addf %349, %354 : vector<8x256xf32>
    %356 = vector.extract_strided_slice %296 {offsets = [0, 10], sizes = [8, 1], strides = [1, 1]} : vector<8x16xf32> to vector<8x1xf32>
    %357 = vector.extract_strided_slice %295 {offsets = [10, 0], sizes = [1, 256], strides = [1, 1]} : vector<16x256xf32> to vector<1x256xf32>
    %358 = vector.broadcast %356 : vector<8x1xf32> to vector<8x256xf32>
    %359 = vector.broadcast %357 : vector<1x256xf32> to vector<8x256xf32>
    %360 = arith.mulf %358, %359 : vector<8x256xf32>
    %361 = arith.addf %355, %360 : vector<8x256xf32>
    %362 = vector.extract_strided_slice %296 {offsets = [0, 11], sizes = [8, 1], strides = [1, 1]} : vector<8x16xf32> to vector<8x1xf32>
    %363 = vector.extract_strided_slice %295 {offsets = [11, 0], sizes = [1, 256], strides = [1, 1]} : vector<16x256xf32> to vector<1x256xf32>
    %364 = vector.broadcast %362 : vector<8x1xf32> to vector<8x256xf32>
    %365 = vector.broadcast %363 : vector<1x256xf32> to vector<8x256xf32>
    %366 = arith.mulf %364, %365 : vector<8x256xf32>
    %367 = arith.addf %361, %366 : vector<8x256xf32>
    %368 = vector.extract_strided_slice %296 {offsets = [0, 12], sizes = [8, 1], strides = [1, 1]} : vector<8x16xf32> to vector<8x1xf32>
    %369 = vector.extract_strided_slice %295 {offsets = [12, 0], sizes = [1, 256], strides = [1, 1]} : vector<16x256xf32> to vector<1x256xf32>
    %370 = vector.broadcast %368 : vector<8x1xf32> to vector<8x256xf32>
    %371 = vector.broadcast %369 : vector<1x256xf32> to vector<8x256xf32>
    %372 = arith.mulf %370, %371 : vector<8x256xf32>
    %373 = arith.addf %367, %372 : vector<8x256xf32>
    %374 = vector.extract_strided_slice %296 {offsets = [0, 13], sizes = [8, 1], strides = [1, 1]} : vector<8x16xf32> to vector<8x1xf32>
    %375 = vector.extract_strided_slice %295 {offsets = [13, 0], sizes = [1, 256], strides = [1, 1]} : vector<16x256xf32> to vector<1x256xf32>
    %376 = vector.broadcast %374 : vector<8x1xf32> to vector<8x256xf32>
    %377 = vector.broadcast %375 : vector<1x256xf32> to vector<8x256xf32>
    %378 = arith.mulf %376, %377 : vector<8x256xf32>
    %379 = arith.addf %373, %378 : vector<8x256xf32>
    %380 = vector.extract_strided_slice %296 {offsets = [0, 14], sizes = [8, 1], strides = [1, 1]} : vector<8x16xf32> to vector<8x1xf32>
    %381 = vector.extract_strided_slice %295 {offsets = [14, 0], sizes = [1, 256], strides = [1, 1]} : vector<16x256xf32> to vector<1x256xf32>
    %382 = vector.broadcast %380 : vector<8x1xf32> to vector<8x256xf32>
    %383 = vector.broadcast %381 : vector<1x256xf32> to vector<8x256xf32>
    %384 = arith.mulf %382, %383 : vector<8x256xf32>
    %385 = arith.addf %379, %384 : vector<8x256xf32>
    %386 = vector.extract_strided_slice %296 {offsets = [0, 15], sizes = [8, 1], strides = [1, 1]} : vector<8x16xf32> to vector<8x1xf32>
    %387 = vector.extract_strided_slice %295 {offsets = [15, 0], sizes = [1, 256], strides = [1, 1]} : vector<16x256xf32> to vector<1x256xf32>
    %388 = vector.broadcast %386 : vector<8x1xf32> to vector<8x256xf32>
    %389 = vector.broadcast %387 : vector<1x256xf32> to vector<8x256xf32>
    %390 = arith.mulf %388, %389 : vector<8x256xf32>
    %391 = arith.addf %385, %390 : vector<8x256xf32>
    %392 = vector.broadcast %140 : vector<8x1xf32> to vector<8x256xf32>
    %393 = arith.addf %391, %392 : vector<8x256xf32>
    %394 = vector.extract_strided_slice %0 {offsets = [0, 256], sizes = [8, 256], strides = [1, 1]} : vector<8x512xf32> to vector<8x256xf32>
    %395 = arith.addf %393, %394 : vector<8x256xf32>
    %c0_48 = arith.constant 0 : index
    %c256 = arith.constant 256 : index
    %396 = vector.load %arg14[%c0_48, %c256] : memref<8x512xf32, #tpu.memory_space<vmem>>, vector<8x256xf32>
    tpu.vector_store %arg14[%c0_48, %c256], %395 {strides = array<i32>} : memref<8x512xf32, #tpu.memory_space<vmem>>, vector<8x256xf32>,
    return
  }
  func.func @transform_0(%arg0: i32) -> (i32, i32) {
    %c0_i32 = arith.constant 0 : i32
    %c0_i32_0 = arith.constant 0 : i32
    return %c0_i32, %arg0 : i32, i32
  }
  func.func @transform_1(%arg0: i32) -> (i32, i32) {
    %c0_i32 = arith.constant 0 : i32
    %c0_i32_0 = arith.constant 0 : i32
    %c0_i32_1 = arith.constant 0 : i32
    return %c0_i32, %c0_i32_0 : i32, i32
  }
  func.func @transform_2(%arg0: i32) -> (i32, i32) {
    %c0_i32 = arith.constant 0 : i32
    %c0_i32_0 = arith.constant 0 : i32
    %c0_i32_1 = arith.constant 0 : i32
    return %c0_i32, %c0_i32_0 : i32, i32
  }
  func.func @transform_3(%arg0: i32) -> (i32, i32) {
    %c0_i32 = arith.constant 0 : i32
    %c0_i32_0 = arith.constant 0 : i32
    %c0_i32_1 = arith.constant 0 : i32
    return %c0_i32, %c0_i32_0 : i32, i32
  }
  func.func @transform_4(%arg0: i32) -> (i32, i32) {
    %c0_i32 = arith.constant 0 : i32
    %c0_i32_0 = arith.constant 0 : i32
    %c0_i32_1 = arith.constant 0 : i32
    return %c0_i32, %c0_i32_0 : i32, i32
  }
  func.func @transform_5(%arg0: i32) -> (i32, i32) {
    %c0_i32 = arith.constant 0 : i32
    %c0_i32_0 = arith.constant 0 : i32
    %c0_i32_1 = arith.constant 0 : i32
    return %c0_i32, %c0_i32_0 : i32, i32
  }
  func.func @transform_6(%arg0: i32) -> (i32, i32) {
    %c0_i32 = arith.constant 0 : i32
    %c0_i32_0 = arith.constant 0 : i32
    %c0_i32_1 = arith.constant 0 : i32
    return %c0_i32, %c0_i32_0 : i32, i32
  }
  func.func @transform_7(%arg0: i32) -> (i32, i32) {
    %c0_i32 = arith.constant 0 : i32
    %c0_i32_0 = arith.constant 0 : i32
    %c0_i32_1 = arith.constant 0 : i32
    return %c0_i32, %c0_i32_0 : i32, i32
  }
  func.func @transform_8(%arg0: i32) -> (i32, i32) {
    %c0_i32 = arith.constant 0 : i32
    %c0_i32_0 = arith.constant 0 : i32
    %c0_i32_1 = arith.constant 0 : i32
    return %c0_i32, %c0_i32_0 : i32, i32
  }
  func.func @transform_9(%arg0: i32) -> (i32, i32) {
    %c0_i32 = arith.constant 0 : i32
    %c0_i32_0 = arith.constant 0 : i32
    %c0_i32_1 = arith.constant 0 : i32
    return %c0_i32, %c0_i32_0 : i32, i32
  }
  func.func @transform_10(%arg0: i32) -> (i32, i32) {
    %c0_i32 = arith.constant 0 : i32
    %c0_i32_0 = arith.constant 0 : i32
    %c0_i32_1 = arith.constant 0 : i32
    return %c0_i32, %c0_i32_0 : i32, i32
  }
  func.func @transform_11(%arg0: i32) -> (i32, i32) {
    %c0_i32 = arith.constant 0 : i32
    %c0_i32_0 = arith.constant 0 : i32
    %c0_i32_1 = arith.constant 0 : i32
    return %c0_i32, %c0_i32_0 : i32, i32
  }
  func.func @transform_12(%arg0: i32) -> (i32, i32) {
    %c0_i32 = arith.constant 0 : i32
    %c0_i32_0 = arith.constant 0 : i32
    %c0_i32_1 = arith.constant 0 : i32
    return %c0_i32, %c0_i32_0 : i32, i32
  }
  func.func @transform_13(%arg0: i32) -> (i32, i32) {
    %c0_i32 = arith.constant 0 : i32
    %c0_i32_0 = arith.constant 0 : i32
    return %c0_i32, %arg0 : i32, i32
  }
}

</mosaic_0001>

<llo_original>
// kernel: tpu_custom_call.1
$region0: #{tpu_custom_call.1}
  #allocation0 [shape = 'u32[]', space=smem, size = 0x4, offset = 0x4, fixed_abs, tag = 'smem constant byte address 0x4 - core index']
  #allocation1 [shape = 'u32[144,128]{1,0:T(1,128)}', space=vmem, size = 0x12000, scoped, tag = 'internal scratch']
  %s0 = inlined_call_operand.vmem [shape: f32[8,512], index: 0, kind: input, shape index: {}]
  %s1 = inlined_call_operand.vmem [shape: f32[9,512], index: 1, kind: input, shape index: {}]
  %s2 = inlined_call_operand.vmem [shape: f32[1,256], index: 2, kind: input, shape index: {}]
  %s3 = inlined_call_operand.vmem [shape: f32[16,8], index: 3, kind: input, shape index: {}]
  %s4 = inlined_call_operand.vmem [shape: f32[16,1], index: 4, kind: input, shape index: {}]
  %s5 = inlined_call_operand.vmem [shape: f32[16,9], index: 5, kind: input, shape index: {}]
  %s6 = inlined_call_operand.vmem [shape: f32[16,1], index: 6, kind: input, shape index: {}]
  %s7 = inlined_call_operand.vmem [shape: f32[16,8], index: 7, kind: input, shape index: {}]
  %s8 = inlined_call_operand.vmem [shape: f32[1,8], index: 8, kind: input, shape index: {}]
  %s9 = inlined_call_operand.vmem [shape: f32[16,8], index: 9, kind: input, shape index: {}]
  %s10 = inlined_call_operand.vmem [shape: f32[16,1], index: 10, kind: input, shape index: {}]
  %s11 = inlined_call_operand.vmem [shape: f32[8,16], index: 11, kind: input, shape index: {}]
  %s12 = inlined_call_operand.vmem [shape: f32[8,1], index: 12, kind: input, shape index: {}]
  %s13 = inlined_call_operand.hbm [shape: f32[8,512], index: 13, kind: output, shape index: {}]
  %s14 = sld [smem:[#allocation0]]
  $region62: #{tpu_custom_call.1} parent=0
    _
  %s16 = ssub.s32 1, %s14
  %s17 = scalar_select 0, %s16, %s14
  $region1: #{tpu_custom_call.1} parent=0
    #allocation2 [shape = 'u8[16384]{0}', space=vmem, size = 0x4000, scoped, tag = 'output window, operand 0, single buffered']
    #allocation3 [shape = 's32[1]{0}', space=sflag, size = 0x4, scoped, tag = 'scoped memory for tpu_custom_call.1']
    %18 = vsyncpa [#allocation3], 0
    // Predicated region
    $region2: #{tpu_custom_call.1} parent=1 // pred_check
      _
    $region3: #{tpu_custom_call.1} parent=1 // pred_check_branch
      %20 = sbr.rel (0) target = $region5
    $region4: #{tpu_custom_call.1} parent=1 // pred_region
      _
    $region5: #{tpu_custom_call.1} parent=1 // pred_fallthru
      _
    // Predicated region
    $region6: #{tpu_custom_call.1} parent=1 // pred_check
      _
    $region7: #{tpu_custom_call.1} parent=1 // pred_check_branch
      %22 = sbr.rel (0) target = $region9
    $region8: #{tpu_custom_call.1} parent=1 // pred_region
      _
    $region9: #{tpu_custom_call.1} parent=1 // pred_fallthru
      _
    // Predicated region
    $region10: #{tpu_custom_call.1} parent=1 // pred_check
      _
    $region11: #{tpu_custom_call.1} parent=1 // pred_check_branch
      %24 = sbr.rel (0) target = $region13
    $region12: #{tpu_custom_call.1} parent=1 // pred_region
      _
    $region13: #{tpu_custom_call.1} parent=1 // pred_fallthru
      _
    // Predicated region
    $region14: #{tpu_custom_call.1} parent=1 // pred_check
      _
    $region15: #{tpu_custom_call.1} parent=1 // pred_check_branch
      %26 = sbr.rel (0) target = $region17
    $region16: #{tpu_custom_call.1} parent=1 // pred_region
      _
    $region17: #{tpu_custom_call.1} parent=1 // pred_fallthru
      _
    // Predicated region
    $region18: #{tpu_custom_call.1} parent=1 // pred_check
      _
    $region19: #{tpu_custom_call.1} parent=1 // pred_check_branch
      %28 = sbr.rel (0) target = $region21
    $region20: #{tpu_custom_call.1} parent=1 // pred_region
      _
    $region21: #{tpu_custom_call.1} parent=1 // pred_fallthru
      _
    // Predicated region
    $region22: #{tpu_custom_call.1} parent=1 // pred_check
      _
    $region23: #{tpu_custom_call.1} parent=1 // pred_check_branch
      %30 = sbr.rel (0) target = $region25
    $region24: #{tpu_custom_call.1} parent=1 // pred_region
      _
    $region25: #{tpu_custom_call.1} parent=1 // pred_fallthru
      _
    // Predicated region
    $region26: #{tpu_custom_call.1} parent=1 // pred_check
      _
    $region27: #{tpu_custom_call.1} parent=1 // pred_check_branch
      %32 = sbr.rel (0) target = $region29
    $region28: #{tpu_custom_call.1} parent=1 // pred_region
      _
    $region29: #{tpu_custom_call.1} parent=1 // pred_fallthru
      _
    // Predicated region
    $region30: #{tpu_custom_call.1} parent=1 // pred_check
      _
    $region31: #{tpu_custom_call.1} parent=1 // pred_check_branch
      %34 = sbr.rel (0) target = $region33
    $region32: #{tpu_custom_call.1} parent=1 // pred_region
      _
    $region33: #{tpu_custom_call.1} parent=1 // pred_fallthru
      _
    // Predicated region
    $region34: #{tpu_custom_call.1} parent=1 // pred_check
      _
    $region35: #{tpu_custom_call.1} parent=1 // pred_check_branch
      %36 = sbr.rel (0) target = $region37
    $region36: #{tpu_custom_call.1} parent=1 // pred_region
      _
    $region37: #{tpu_custom_call.1} parent=1 // pred_fallthru
      _
    // Predicated region
    $region38: #{tpu_custom_call.1} parent=1 // pred_check
      _
    $region39: #{tpu_custom_call.1} parent=1 // pred_check_branch
      %38 = sbr.rel (0) target = $region41
    $region40: #{tpu_custom_call.1} parent=1 // pred_region
      _
    $region41: #{tpu_custom_call.1} parent=1 // pred_fallthru
      _
    // Predicated region
    $region42: #{tpu_custom_call.1} parent=1 // pred_check
      _
    $region43: #{tpu_custom_call.1} parent=1 // pred_check_branch
      %40 = sbr.rel (0) target = $region45
    $region44: #{tpu_custom_call.1} parent=1 // pred_region
      _
    $region45: #{tpu_custom_call.1} parent=1 // pred_fallthru
      _
    // Predicated region
    $region46: #{tpu_custom_call.1} parent=1 // pred_check
      _
    $region47: #{tpu_custom_call.1} parent=1 // pred_check_branch
      %42 = sbr.rel (0) target = $region49
    $region48: #{tpu_custom_call.1} parent=1 // pred_region
      _
    $region49: #{tpu_custom_call.1} parent=1 // pred_fallthru
      _
    // Predicated region
    $region50: #{tpu_custom_call.1} parent=1 // pred_check
      _
    $region51: #{tpu_custom_call.1} parent=1 // pred_check_branch
      %44 = sbr.rel (0) target = $region53
    $region52: #{tpu_custom_call.1} parent=1 // pred_region
      _
    $region53: #{tpu_custom_call.1} parent=1 // pred_fallthru
      _
    %v45 = vld [vmem:[%s0] sm:$0xff]
    %v46 = vld [vmem:[%s0 + $0x8] sm:$0xff]
    %v47 = vld [vmem:[%s0 + $0x10] sm:$0xff]
    %v48 = vld [vmem:[%s0 + $0x18] sm:$0xff]
    %v49 = vld [vmem:[%s3] sm:$0xff]
    %v50 = vld [vmem:[%s3 + $0x8] sm:$0xff]
    %52 = vset.pattern.permute.xlu0 0
    %53 = vperm.xlu0 %52, %v49
    %v54 = vpop.permute.xlu0 %53
    %57 = vset.pattern.permute.xlu0 0
    %58 = vperm.xlu0 %57, %v50
    %v59 = vpop.permute.xlu0 %58
    %v61 = vlaneseq
    %v62 = vshrl.u32 %v61, 7
    %v63 = vsub.s32 0, %v62
    %v64 = vrot.slane %v45, %v63
    %v65 = vlaneseq
    %v66 = vshrl.u32 %v65, 7
    %v67 = vsub.s32 0, %v66
    %v68 = vrot.slane %v46, %v67
    %v69 = vlaneseq
    %v70 = vshrl.u32 %v69, 7
    %v71 = vsub.s32 0, %v70
    %v72 = vrot.slane %v47, %v71
    %v73 = vlaneseq
    %v74 = vshrl.u32 %v73, 7
    %v75 = vsub.s32 0, %v74
    %v76 = vrot.slane %v48, %v75
    %v77 = vmul.f32 %v54, %v64
    %v78 = vmul.f32 %v54, %v68
    %v79 = vmul.f32 %v54, %v72
    %v80 = vmul.f32 %v54, %v76
    %v81 = vmul.f32 %v59, %v64
    %v82 = vmul.f32 %v59, %v68
    %v83 = vmul.f32 %v59, %v72
    %v84 = vmul.f32 %v59, %v76
    %85 = vset.pattern.permute.xlu0 1
    %86 = vperm.xlu0 %85, %v49
    %v87 = vpop.permute.xlu0 %86
    %89 = vset.pattern.permute.xlu0 1
    %90 = vperm.xlu0 %89, %v50
    %v91 = vpop.permute.xlu0 %90
    %v93 = vlaneseq
    %v94 = vshrl.u32 %v93, 7
    %v95 = vsub.s32 1, %v94
    %v96 = vrot.slane %v45, %v95
    %v97 = vlaneseq
    %v98 = vshrl.u32 %v97, 7
    %v99 = vsub.s32 1, %v98
    %v100 = vrot.slane %v46, %v99
    %v101 = vlaneseq
    %v102 = vshrl.u32 %v101, 7
    %v103 = vsub.s32 1, %v102
    %v104 = vrot.slane %v47, %v103
    %v105 = vlaneseq
    %v106 = vshrl.u32 %v105, 7
    %v107 = vsub.s32 1, %v106
    %v108 = vrot.slane %v48, %v107
    %v109 = vmul.f32 %v87, %v96
    %v110 = vmul.f32 %v87, %v100
    %v111 = vmul.f32 %v87, %v104
    %v112 = vmul.f32 %v87, %v108
    %v113 = vmul.f32 %v91, %v96
    %v114 = vmul.f32 %v91, %v100
    %v115 = vmul.f32 %v91, %v104
    %v116 = vmul.f32 %v91, %v108
    %v117 = vadd.f32 %v77, %v109
    %v118 = vadd.f32 %v78, %v110
    %v119 = vadd.f32 %v79, %v111
    %v120 = vadd.f32 %v80, %v112
    %v121 = vadd.f32 %v81, %v113
    %v122 = vadd.f32 %v82, %v114
    %v123 = vadd.f32 %v83, %v115
    %v124 = vadd.f32 %v84, %v116
    %125 = vset.pattern.permute.xlu0 2
    %126 = vperm.xlu0 %125, %v49
    %v127 = vpop.permute.xlu0 %126
    %129 = vset.pattern.permute.xlu0 2
    %130 = vperm.xlu0 %129, %v50
    %v131 = vpop.permute.xlu0 %130
    %v133 = vlaneseq
    %v134 = vshrl.u32 %v133, 7
    %v135 = vsub.s32 2, %v134
    %v136 = vrot.slane %v45, %v135
    %v137 = vlaneseq
    %v138 = vshrl.u32 %v137, 7
    %v139 = vsub.s32 2, %v138
    %v140 = vrot.slane %v46, %v139
    %v141 = vlaneseq
    %v142 = vshrl.u32 %v141, 7
    %v143 = vsub.s32 2, %v142
    %v144 = vrot.slane %v47, %v143
    %v145 = vlaneseq
    %v146 = vshrl.u32 %v145, 7
    %v147 = vsub.s32 2, %v146
    %v148 = vrot.slane %v48, %v147
    %v149 = vmul.f32 %v127, %v136
    %v150 = vmul.f32 %v127, %v140
    %v151 = vmul.f32 %v127, %v144
    %v152 = vmul.f32 %v127, %v148
    %v153 = vmul.f32 %v131, %v136
    %v154 = vmul.f32 %v131, %v140
    %v155 = vmul.f32 %v131, %v144
    %v156 = vmul.f32 %v131, %v148
    %v157 = vadd.f32 %v117, %v149
    %v158 = vadd.f32 %v118, %v150
    %v159 = vadd.f32 %v119, %v151
    %v160 = vadd.f32 %v120, %v152
    %v161 = vadd.f32 %v121, %v153
    %v162 = vadd.f32 %v122, %v154
    %v163 = vadd.f32 %v123, %v155
    %v164 = vadd.f32 %v124, %v156
    %165 = vset.pattern.permute.xlu0 3
    %166 = vperm.xlu0 %165, %v49
    %v167 = vpop.permute.xlu0 %166
    %169 = vset.pattern.permute.xlu0 3
    %170 = vperm.xlu0 %169, %v50
    %v171 = vpop.permute.xlu0 %170
    %v173 = vlaneseq
    %v174 = vshrl.u32 %v173, 7
    %v175 = vsub.s32 3, %v174
    %v176 = vrot.slane %v45, %v175
    %v177 = vlaneseq
    %v178 = vshrl.u32 %v177, 7
    %v179 = vsub.s32 3, %v178
    %v180 = vrot.slane %v46, %v179
    %v181 = vlaneseq
    %v182 = vshrl.u32 %v181, 7
    %v183 = vsub.s32 3, %v182
    %v184 = vrot.slane %v47, %v183
    %v185 = vlaneseq
    %v186 = vshrl.u32 %v185, 7
    %v187 = vsub.s32 3, %v186
    %v188 = vrot.slane %v48, %v187
    %v189 = vmul.f32 %v167, %v176
    %v190 = vmul.f32 %v167, %v180
    %v191 = vmul.f32 %v167, %v184
    %v192 = vmul.f32 %v167, %v188
    %v193 = vmul.f32 %v171, %v176
    %v194 = vmul.f32 %v171, %v180
    %v195 = vmul.f32 %v171, %v184
    %v196 = vmul.f32 %v171, %v188
    %v197 = vadd.f32 %v157, %v189
    %v198 = vadd.f32 %v158, %v190
    %v199 = vadd.f32 %v159, %v191
    %v200 = vadd.f32 %v160, %v192
    %v201 = vadd.f32 %v161, %v193
    %v202 = vadd.f32 %v162, %v194
    %v203 = vadd.f32 %v163, %v195
    %v204 = vadd.f32 %v164, %v196
    %205 = vset.pattern.permute.xlu0 4
    %206 = vperm.xlu0 %205, %v49
    %v207 = vpop.permute.xlu0 %206
    %209 = vset.pattern.permute.xlu0 4
    %210 = vperm.xlu0 %209, %v50
    %v211 = vpop.permute.xlu0 %210
    %v213 = vlaneseq
    %v214 = vshrl.u32 %v213, 7
    %v215 = vsub.s32 4, %v214
    %v216 = vrot.slane %v45, %v215
    %v217 = vlaneseq
    %v218 = vshrl.u32 %v217, 7
    %v219 = vsub.s32 4, %v218
    %v220 = vrot.slane %v46, %v219
    %v221 = vlaneseq
    %v222 = vshrl.u32 %v221, 7
    %v223 = vsub.s32 4, %v222
    %v224 = vrot.slane %v47, %v223
    %v225 = vlaneseq
    %v226 = vshrl.u32 %v225, 7
    %v227 = vsub.s32 4, %v226
    %v228 = vrot.slane %v48, %v227
    %v229 = vmul.f32 %v207, %v216
    %v230 = vmul.f32 %v207, %v220
    %v231 = vmul.f32 %v207, %v224
    %v232 = vmul.f32 %v207, %v228
    %v233 = vmul.f32 %v211, %v216
    %v234 = vmul.f32 %v211, %v220
    %v235 = vmul.f32 %v211, %v224
    %v236 = vmul.f32 %v211, %v228
    %v237 = vadd.f32 %v197, %v229
    %v238 = vadd.f32 %v198, %v230
    %v239 = vadd.f32 %v199, %v231
    %v240 = vadd.f32 %v200, %v232
    %v241 = vadd.f32 %v201, %v233
    %v242 = vadd.f32 %v202, %v234
    %v243 = vadd.f32 %v203, %v235
    %v244 = vadd.f32 %v204, %v236
    %245 = vset.pattern.permute.xlu0 5
    %246 = vperm.xlu0 %245, %v49
    %v247 = vpop.permute.xlu0 %246
    %249 = vset.pattern.permute.xlu0 5
    %250 = vperm.xlu0 %249, %v50
    %v251 = vpop.permute.xlu0 %250
    %v253 = vlaneseq
    %v254 = vshrl.u32 %v253, 7
    %v255 = vsub.s32 5, %v254
    %v256 = vrot.slane %v45, %v255
    %v257 = vlaneseq
    %v258 = vshrl.u32 %v257, 7
    %v259 = vsub.s32 5, %v258
    %v260 = vrot.slane %v46, %v259
    %v261 = vlaneseq
    %v262 = vshrl.u32 %v261, 7
    %v263 = vsub.s32 5, %v262
    %v264 = vrot.slane %v47, %v263
    %v265 = vlaneseq
    %v266 = vshrl.u32 %v265, 7
    %v267 = vsub.s32 5, %v266
    %v268 = vrot.slane %v48, %v267
    %v269 = vmul.f32 %v247, %v256
    %v270 = vmul.f32 %v247, %v260
    %v271 = vmul.f32 %v247, %v264
    %v272 = vmul.f32 %v247, %v268
    %v273 = vmul.f32 %v251, %v256
    %v274 = vmul.f32 %v251, %v260
    %v275 = vmul.f32 %v251, %v264
    %v276 = vmul.f32 %v251, %v268
    %v277 = vadd.f32 %v237, %v269
    %v278 = vadd.f32 %v238, %v270
    %v279 = vadd.f32 %v239, %v271
    %v280 = vadd.f32 %v240, %v272
    %v281 = vadd.f32 %v241, %v273
    %v282 = vadd.f32 %v242, %v274
    %v283 = vadd.f32 %v243, %v275
    %v284 = vadd.f32 %v244, %v276
    %285 = vset.pattern.permute.xlu0 6
    %286 = vperm.xlu0 %285, %v49
    %v287 = vpop.permute.xlu0 %286
    %289 = vset.pattern.permute.xlu0 6
    %290 = vperm.xlu0 %289, %v50
    %v291 = vpop.permute.xlu0 %290
    %v293 = vlaneseq
    %v294 = vshrl.u32 %v293, 7
    %v295 = vsub.s32 6, %v294
    %v296 = vrot.slane %v45, %v295
    %v297 = vlaneseq
    %v298 = vshrl.u32 %v297, 7
    %v299 = vsub.s32 6, %v298
    %v300 = vrot.slane %v46, %v299
    %v301 = vlaneseq
    %v302 = vshrl.u32 %v301, 7
    %v303 = vsub.s32 6, %v302
    %v304 = vrot.slane %v47, %v303
    %v305 = vlaneseq
    %v306 = vshrl.u32 %v305, 7
    %v307 = vsub.s32 6, %v306
    %v308 = vrot.slane %v48, %v307
    %v309 = vmul.f32 %v287, %v296
    %v310 = vmul.f32 %v287, %v300
    %v311 = vmul.f32 %v287, %v304
    %v312 = vmul.f32 %v287, %v308
    %v313 = vmul.f32 %v291, %v296
    %v314 = vmul.f32 %v291, %v300
    %v315 = vmul.f32 %v291, %v304
    %v316 = vmul.f32 %v291, %v308
    %v317 = vadd.f32 %v277, %v309
    %v318 = vadd.f32 %v278, %v310
    %v319 = vadd.f32 %v279, %v311
    %v320 = vadd.f32 %v280, %v312
    %v321 = vadd.f32 %v281, %v313
    %v322 = vadd.f32 %v282, %v314
    %v323 = vadd.f32 %v283, %v315
    %v324 = vadd.f32 %v284, %v316
    %325 = vset.pattern.permute.xlu0 7
    %326 = vperm.xlu0 %325, %v49
    %v327 = vpop.permute.xlu0 %326
    %329 = vset.pattern.permute.xlu0 7
    %330 = vperm.xlu0 %329, %v50
    %v331 = vpop.permute.xlu0 %330
    %v333 = vlaneseq
    %v334 = vshrl.u32 %v333, 7
    %v335 = vsub.s32 7, %v334
    %v336 = vrot.slane %v45, %v335
    %v337 = vlaneseq
    %v338 = vshrl.u32 %v337, 7
    %v339 = vsub.s32 7, %v338
    %v340 = vrot.slane %v46, %v339
    %v341 = vlaneseq
    %v342 = vshrl.u32 %v341, 7
    %v343 = vsub.s32 7, %v342
    %v344 = vrot.slane %v47, %v343
    %v345 = vlaneseq
    %v346 = vshrl.u32 %v345, 7
    %v347 = vsub.s32 7, %v346
    %v348 = vrot.slane %v48, %v347
    %v349 = vmul.f32 %v327, %v336
    %v350 = vmul.f32 %v327, %v340
    %v351 = vmul.f32 %v327, %v344
    %v352 = vmul.f32 %v327, %v348
    %v353 = vmul.f32 %v331, %v336
    %v354 = vmul.f32 %v331, %v340
    %v355 = vmul.f32 %v331, %v344
    %v356 = vmul.f32 %v331, %v348
    %v357 = vadd.f32 %v317, %v349
    %v358 = vadd.f32 %v318, %v350
    %v359 = vadd.f32 %v319, %v351
    %v360 = vadd.f32 %v320, %v352
    %v361 = vadd.f32 %v321, %v353
    %v362 = vadd.f32 %v322, %v354
    %v363 = vadd.f32 %v323, %v355
    %v364 = vadd.f32 %v324, %v356
    %v365 = vld [vmem:[%s4] sm:$0xff]
    %v366 = vld [vmem:[%s4 + $0x8] sm:$0xff]
    %368 = vset.pattern.permute.xlu0 0
    %369 = vperm.xlu0 %368, %v365
    %v370 = vpop.permute.xlu0 %369
    %373 = vset.pattern.permute.xlu0 0
    %374 = vperm.xlu0 %373, %v366
    %v375 = vpop.permute.xlu0 %374
    %v377 = vadd.f32 %v357, %v370
    %v378 = vadd.f32 %v358, %v370
    %v379 = vadd.f32 %v359, %v370
    %v380 = vadd.f32 %v360, %v370
    %v381 = vadd.f32 %v361, %v375
    %v382 = vadd.f32 %v362, %v375
    %v383 = vadd.f32 %v363, %v375
    %v384 = vadd.f32 %v364, %v375
    %v385 = vmax.f32 %v377, 0.0
    %v386 = vmax.f32 %v378, 0.0
    %v387 = vmax.f32 %v379, 0.0
    %v388 = vmax.f32 %v380, 0.0
    %v389 = vmax.f32 %v381, 0.0
    %v390 = vmax.f32 %v382, 0.0
    %v391 = vmax.f32 %v383, 0.0
    %v392 = vmax.f32 %v384, 0.0
    %v393 = vmin.f32 %v385, 6.0
    %v394 = vmin.f32 %v386, 6.0
    %v395 = vmin.f32 %v387, 6.0
    %v396 = vmin.f32 %v388, 6.0
    %v397 = vmin.f32 %v389, 6.0
    %v398 = vmin.f32 %v390, 6.0
    %v399 = vmin.f32 %v391, 6.0
    %v400 = vmin.f32 %v392, 6.0
    %v401 = vld [vmem:[%s5] sm:$0xff]
    %v402 = vld [vmem:[%s5 + $0x8] sm:$0xff]
    %v403 = vld [vmem:[%s1] sm:$0xff]
    %v404 = vld [vmem:[%s1 + $0x8] sm:$0xff]
    %v405 = vld [vmem:[%s1 + $0x10] sm:$0xff]
    %v406 = vld [vmem:[%s1 + $0x18] sm:$0xff]
    %v407 = vld [vmem:[%s1 + $0x20] sm:$0x1]
    %v408 = vld [vmem:[%s1 + $0x28] sm:$0x1]
    %v409 = vld [vmem:[%s1 + $0x30] sm:$0x1]
    %v410 = vld [vmem:[%s1 + $0x38] sm:$0x1]
    %411 = vrot.lane.b32.xlu0 %v393, 17
    %v412 = vpop.permute.xlu0 %411
    %413 = vrot.lane.b32.xlu0 %v397, 17
    %v414 = vpop.permute.xlu0 %413
    %415 = vrot.lane.b32.xlu0 %v394, 17
    %v416 = vpop.permute.xlu0 %415
    %417 = vrot.lane.b32.xlu0 %v398, 17
    %v418 = vpop.permute.xlu0 %417
    %419 = vrot.lane.b32.xlu0 %v395, 17
    %v420 = vpop.permute.xlu0 %419
    %421 = vrot.lane.b32.xlu0 %v399, 17
    %v422 = vpop.permute.xlu0 %421
    %423 = vrot.lane.b32.xlu0 %v396, 17
    %v424 = vpop.permute.xlu0 %423
    %425 = vrot.lane.b32.xlu0 %v400, 17
    %v426 = vpop.permute.xlu0 %425
    %v427 = vlaneseq
    %v428 = vand.u32 %v427, 127
    %vm429 = vcmp.lt.s32.totalorder %v428, 17
    %v430 = vsel %vm429, %v420, %v424
    %v431 = vsel %vm429, %v422, %v426
    %v432 = vsel %vm429, %v416, %v420
    %v433 = vsel %vm429, %v418, %v422
    %v434 = vsel %vm429, %v412, %v416
    %v435 = vsel %vm429, %v414, %v418
    %v436 = vsel %vm429, %v424, %v412
    %v437 = vsel %vm429, %v426, %v414
    %439 = vset.pattern.permute.xlu0 0
    %440 = vperm.xlu0 %439, %v401
    %v441 = vpop.permute.xlu0 %440
    %444 = vset.pattern.permute.xlu0 0
    %445 = vperm.xlu0 %444, %v402
    %v446 = vpop.permute.xlu0 %445
    %v448 = vlaneseq
    %v449 = vshrl.u32 %v448, 7
    %v450 = vsub.s32 0, %v449
    %v451 = vrot.slane %v403, %v450
    %v452 = vlaneseq
    %v453 = vshrl.u32 %v452, 7
    %v454 = vsub.s32 0, %v453
    %v455 = vrot.slane %v404, %v454
    %v456 = vlaneseq
    %v457 = vshrl.u32 %v456, 7
    %v458 = vsub.s32 0, %v457
    %v459 = vrot.slane %v405, %v458
    %v460 = vlaneseq
    %v461 = vshrl.u32 %v460, 7
    %v462 = vsub.s32 0, %v461
    %v463 = vrot.slane %v406, %v462
    %v464 = vmul.f32 %v441, %v451
    %v465 = vmul.f32 %v441, %v455
    %v466 = vmul.f32 %v441, %v459
    %v467 = vmul.f32 %v441, %v463
    %v468 = vmul.f32 %v446, %v451
    %v469 = vmul.f32 %v446, %v455
    %v470 = vmul.f32 %v446, %v459
    %v471 = vmul.f32 %v446, %v463
    %v472 = vmul.f32 %v436, %v464
    %v473 = vmul.f32 %v434, %v465
    %v474 = vmul.f32 %v432, %v466
    %v475 = vmul.f32 %v430, %v467
    %v476 = vmul.f32 %v437, %v468
    %v477 = vmul.f32 %v435, %v469
    %v478 = vmul.f32 %v433, %v470
    %v479 = vmul.f32 %v431, %v471
    %480 = vrot.lane.b32.xlu0 %v393, 16
    %v481 = vpop.permute.xlu0 %480
    %482 = vrot.lane.b32.xlu0 %v397, 16
    %v483 = vpop.permute.xlu0 %482
    %484 = vrot.lane.b32.xlu0 %v394, 16
    %v485 = vpop.permute.xlu0 %484
    %486 = vrot.lane.b32.xlu0 %v398, 16
    %v487 = vpop.permute.xlu0 %486
    %488 = vrot.lane.b32.xlu0 %v395, 16
    %v489 = vpop.permute.xlu0 %488
    %490 = vrot.lane.b32.xlu0 %v399, 16
    %v491 = vpop.permute.xlu0 %490
    %492 = vrot.lane.b32.xlu0 %v396, 16
    %v493 = vpop.permute.xlu0 %492
    %494 = vrot.lane.b32.xlu0 %v400, 16
    %v495 = vpop.permute.xlu0 %494
    %vm496 = vcmp.lt.s32.totalorder %v428, 16
    %v497 = vsel %vm496, %v489, %v493
    %v498 = vsel %vm496, %v491, %v495
    %v499 = vsel %vm496, %v485, %v489
    %v500 = vsel %vm496, %v487, %v491
    %v501 = vsel %vm496, %v481, %v485
    %v502 = vsel %vm496, %v483, %v487
    %v503 = vsel %vm496, %v493, %v481
    %v504 = vsel %vm496, %v495, %v483
    %505 = vset.pattern.permute.xlu0 1
    %506 = vperm.xlu0 %505, %v401
    %v507 = vpop.permute.xlu0 %506
    %509 = vset.pattern.permute.xlu0 1
    %510 = vperm.xlu0 %509, %v402
    %v511 = vpop.permute.xlu0 %510
    %v513 = vlaneseq
    %v514 = vshrl.u32 %v513, 7
    %v515 = vsub.s32 1, %v514
    %v516 = vrot.slane %v403, %v515
    %v517 = vlaneseq
    %v518 = vshrl.u32 %v517, 7
    %v519 = vsub.s32 1, %v518
    %v520 = vrot.slane %v404, %v519
    %v521 = vlaneseq
    %v522 = vshrl.u32 %v521, 7
    %v523 = vsub.s32 1, %v522
    %v524 = vrot.slane %v405, %v523
    %v525 = vlaneseq
    %v526 = vshrl.u32 %v525, 7
    %v527 = vsub.s32 1, %v526
    %v528 = vrot.slane %v406, %v527
    %v529 = vmul.f32 %v507, %v516
    %v530 = vmul.f32 %v507, %v520
    %v531 = vmul.f32 %v507, %v524
    %v532 = vmul.f32 %v507, %v528
    %v533 = vmul.f32 %v511, %v516
    %v534 = vmul.f32 %v511, %v520
    %v535 = vmul.f32 %v511, %v524
    %v536 = vmul.f32 %v511, %v528
    %v537 = vmul.f32 %v503, %v529
    %v538 = vmul.f32 %v501, %v530
    %v539 = vmul.f32 %v499, %v531
    %v540 = vmul.f32 %v497, %v532
    %v541 = vmul.f32 %v504, %v533
    %v542 = vmul.f32 %v502, %v534
    %v543 = vmul.f32 %v500, %v535
    %v544 = vmul.f32 %v498, %v536
    %v545 = vadd.f32 %v472, %v537
    %v546 = vadd.f32 %v473, %v538
    %v547 = vadd.f32 %v474, %v539
    %v548 = vadd.f32 %v475, %v540
    %v549 = vadd.f32 %v476, %v541
    %v550 = vadd.f32 %v477, %v542
    %v551 = vadd.f32 %v478, %v543
    %v552 = vadd.f32 %v479, %v544
    %553 = vrot.lane.b32.xlu0 %v393, 15
    %v554 = vpop.permute.xlu0 %553
    %555 = vrot.lane.b32.xlu0 %v397, 15
    %v556 = vpop.permute.xlu0 %555
    %557 = vrot.lane.b32.xlu0 %v394, 15
    %v558 = vpop.permute.xlu0 %557
    %559 = vrot.lane.b32.xlu0 %v398, 15
    %v560 = vpop.permute.xlu0 %559
    %561 = vrot.lane.b32.xlu0 %v395, 15
    %v562 = vpop.permute.xlu0 %561
    %563 = vrot.lane.b32.xlu0 %v399, 15
    %v564 = vpop.permute.xlu0 %563
    %565 = vrot.lane.b32.xlu0 %v396, 15
    %v566 = vpop.permute.xlu0 %565
    %567 = vrot.lane.b32.xlu0 %v400, 15
    %v568 = vpop.permute.xlu0 %567
    %vm569 = vcmp.lt.s32.totalorder %v428, 15
    %v570 = vsel %vm569, %v562, %v566
    %v571 = vsel %vm569, %v564, %v568
    %v572 = vsel %vm569, %v558, %v562
    %v573 = vsel %vm569, %v560, %v564
    %v574 = vsel %vm569, %v554, %v558
    %v575 = vsel %vm569, %v556, %v560
    %v576 = vsel %vm569, %v566, %v554
    %v577 = vsel %vm569, %v568, %v556
    %578 = vset.pattern.permute.xlu0 2
    %579 = vperm.xlu0 %578, %v401
    %v580 = vpop.permute.xlu0 %579
    %582 = vset.pattern.permute.xlu0 2
    %583 = vperm.xlu0 %582, %v402
    %v584 = vpop.permute.xlu0 %583
    %v586 = vlaneseq
    %v587 = vshrl.u32 %v586, 7
    %v588 = vsub.s32 2, %v587
    %v589 = vrot.slane %v403, %v588
    %v590 = vlaneseq
    %v591 = vshrl.u32 %v590, 7
    %v592 = vsub.s32 2, %v591
    %v593 = vrot.slane %v404, %v592
    %v594 = vlaneseq
    %v595 = vshrl.u32 %v594, 7
    %v596 = vsub.s32 2, %v595
    %v597 = vrot.slane %v405, %v596
    %v598 = vlaneseq
    %v599 = vshrl.u32 %v598, 7
    %v600 = vsub.s32 2, %v599
    %v601 = vrot.slane %v406, %v600
    %v602 = vmul.f32 %v580, %v589
    %v603 = vmul.f32 %v580, %v593
    %v604 = vmul.f32 %v580, %v597
    %v605 = vmul.f32 %v580, %v601
    %v606 = vmul.f32 %v584, %v589
    %v607 = vmul.f32 %v584, %v593
    %v608 = vmul.f32 %v584, %v597
    %v609 = vmul.f32 %v584, %v601
    %v610 = vmul.f32 %v576, %v602
    %v611 = vmul.f32 %v574, %v603
    %v612 = vmul.f32 %v572, %v604
    %v613 = vmul.f32 %v570, %v605
    %v614 = vmul.f32 %v577, %v606
    %v615 = vmul.f32 %v575, %v607
    %v616 = vmul.f32 %v573, %v608
    %v617 = vmul.f32 %v571, %v609
    %v618 = vadd.f32 %v545, %v610
    %v619 = vadd.f32 %v546, %v611
    %v620 = vadd.f32 %v547, %v612
    %v621 = vadd.f32 %v548, %v613
    %v622 = vadd.f32 %v549, %v614
    %v623 = vadd.f32 %v550, %v615
    %v624 = vadd.f32 %v551, %v616
    %v625 = vadd.f32 %v552, %v617
    %626 = vrot.lane.b32.xlu0 %v393, 1
    %v627 = vpop.permute.xlu0 %626
    %628 = vrot.lane.b32.xlu0 %v397, 1
    %v629 = vpop.permute.xlu0 %628
    %630 = vrot.lane.b32.xlu0 %v394, 1
    %v631 = vpop.permute.xlu0 %630
    %632 = vrot.lane.b32.xlu0 %v398, 1
    %v633 = vpop.permute.xlu0 %632
    %634 = vrot.lane.b32.xlu0 %v395, 1
    %v635 = vpop.permute.xlu0 %634
    %636 = vrot.lane.b32.xlu0 %v399, 1
    %v637 = vpop.permute.xlu0 %636
    %638 = vrot.lane.b32.xlu0 %v396, 1
    %v639 = vpop.permute.xlu0 %638
    %640 = vrot.lane.b32.xlu0 %v400, 1
    %v641 = vpop.permute.xlu0 %640
    %vm642 = vcmp.lt.s32.totalorder %v428, 1
    %v643 = vsel %vm642, %v635, %v639
    %v644 = vsel %vm642, %v637, %v641
    %v645 = vsel %vm642, %v631, %v635
    %v646 = vsel %vm642, %v633, %v637
    %v647 = vsel %vm642, %v627, %v631
    %v648 = vsel %vm642, %v629, %v633
    %v649 = vsel %vm642, %v639, %v627
    %v650 = vsel %vm642, %v641, %v629
    %651 = vset.pattern.permute.xlu0 3
    %652 = vperm.xlu0 %651, %v401
    %v653 = vpop.permute.xlu0 %652
    %655 = vset.pattern.permute.xlu0 3
    %656 = vperm.xlu0 %655, %v402
    %v657 = vpop.permute.xlu0 %656
    %v659 = vlaneseq
    %v660 = vshrl.u32 %v659, 7
    %v661 = vsub.s32 3, %v660
    %v662 = vrot.slane %v403, %v661
    %v663 = vlaneseq
    %v664 = vshrl.u32 %v663, 7
    %v665 = vsub.s32 3, %v664
    %v666 = vrot.slane %v404, %v665
    %v667 = vlaneseq
    %v668 = vshrl.u32 %v667, 7
    %v669 = vsub.s32 3, %v668
    %v670 = vrot.slane %v405, %v669
    %v671 = vlaneseq
    %v672 = vshrl.u32 %v671, 7
    %v673 = vsub.s32 3, %v672
    %v674 = vrot.slane %v406, %v673
    %v675 = vmul.f32 %v653, %v662
    %v676 = vmul.f32 %v653, %v666
    %v677 = vmul.f32 %v653, %v670
    %v678 = vmul.f32 %v653, %v674
    %v679 = vmul.f32 %v657, %v662
    %v680 = vmul.f32 %v657, %v666
    %v681 = vmul.f32 %v657, %v670
    %v682 = vmul.f32 %v657, %v674
    %v683 = vmul.f32 %v649, %v675
    %v684 = vmul.f32 %v647, %v676
    %v685 = vmul.f32 %v645, %v677
    %v686 = vmul.f32 %v643, %v678
    %v687 = vmul.f32 %v650, %v679
    %v688 = vmul.f32 %v648, %v680
    %v689 = vmul.f32 %v646, %v681
    %v690 = vmul.f32 %v644, %v682
    %v691 = vadd.f32 %v618, %v683
    %v692 = vadd.f32 %v619, %v684
    %v693 = vadd.f32 %v620, %v685
    %v694 = vadd.f32 %v621, %v686
    %v695 = vadd.f32 %v622, %v687
    %v696 = vadd.f32 %v623, %v688
    %v697 = vadd.f32 %v624, %v689
    %v698 = vadd.f32 %v625, %v690
    %699 = vset.pattern.permute.xlu0 4
    %700 = vperm.xlu0 %699, %v401
    %v701 = vpop.permute.xlu0 %700
    %703 = vset.pattern.permute.xlu0 4
    %704 = vperm.xlu0 %703, %v402
    %v705 = vpop.permute.xlu0 %704
    %v707 = vlaneseq
    %v708 = vshrl.u32 %v707, 7
    %v709 = vsub.s32 4, %v708
    %v710 = vrot.slane %v403, %v709
    %v711 = vlaneseq
    %v712 = vshrl.u32 %v711, 7
    %v713 = vsub.s32 4, %v712
    %v714 = vrot.slane %v404, %v713
    %v715 = vlaneseq
    %v716 = vshrl.u32 %v715, 7
    %v717 = vsub.s32 4, %v716
    %v718 = vrot.slane %v405, %v717
    %v719 = vlaneseq
    %v720 = vshrl.u32 %v719, 7
    %v721 = vsub.s32 4, %v720
    %v722 = vrot.slane %v406, %v721
    %v723 = vmul.f32 %v701, %v710
    %v724 = vmul.f32 %v701, %v714
    %v725 = vmul.f32 %v701, %v718
    %v726 = vmul.f32 %v701, %v722
    %v727 = vmul.f32 %v705, %v710
    %v728 = vmul.f32 %v705, %v714
    %v729 = vmul.f32 %v705, %v718
    %v730 = vmul.f32 %v705, %v722
    %v731 = vmul.f32 %v393, %v723
    %v732 = vmul.f32 %v394, %v724
    %v733 = vmul.f32 %v395, %v725
    %v734 = vmul.f32 %v396, %v726
    %v735 = vmul.f32 %v397, %v727
    %v736 = vmul.f32 %v398, %v728
    %v737 = vmul.f32 %v399, %v729
    %v738 = vmul.f32 %v400, %v730
    %v739 = vadd.f32 %v691, %v731
    %v740 = vadd.f32 %v692, %v732
    %v741 = vadd.f32 %v693, %v733
    %v742 = vadd.f32 %v694, %v734
    %v743 = vadd.f32 %v695, %v735
    %v744 = vadd.f32 %v696, %v736
    %v745 = vadd.f32 %v697, %v737
    %v746 = vadd.f32 %v698, %v738
    %747 = vrot.lane.b32.xlu0 %v393, 127
    %v748 = vpop.permute.xlu0 %747
    %749 = vrot.lane.b32.xlu0 %v397, 127
    %v750 = vpop.permute.xlu0 %749
    %751 = vrot.lane.b32.xlu0 %v394, 127
    %v752 = vpop.permute.xlu0 %751
    %753 = vrot.lane.b32.xlu0 %v398, 127
    %v754 = vpop.permute.xlu0 %753
    %755 = vrot.lane.b32.xlu0 %v395, 127
    %v756 = vpop.permute.xlu0 %755
    %757 = vrot.lane.b32.xlu0 %v399, 127
    %v758 = vpop.permute.xlu0 %757
    %759 = vrot.lane.b32.xlu0 %v396, 127
    %v760 = vpop.permute.xlu0 %759
    %761 = vrot.lane.b32.xlu0 %v400, 127
    %v762 = vpop.permute.xlu0 %761
    %vm763 = vcmp.lt.s32.totalorder %v428, 127
    %v764 = vsel %vm763, %v756, %v760
    %v765 = vsel %vm763, %v758, %v762
    %v766 = vsel %vm763, %v752, %v756
    %v767 = vsel %vm763, %v754, %v758
    %v768 = vsel %vm763, %v748, %v752
    %v769 = vsel %vm763, %v750, %v754
    %v770 = vsel %vm763, %v760, %v748
    %v771 = vsel %vm763, %v762, %v750
    %772 = vset.pattern.permute.xlu0 5
    %773 = vperm.xlu0 %772, %v401
    %v774 = vpop.permute.xlu0 %773
    %776 = vset.pattern.permute.xlu0 5
    %777 = vperm.xlu0 %776, %v402
    %v778 = vpop.permute.xlu0 %777
    %v780 = vlaneseq
    %v781 = vshrl.u32 %v780, 7
    %v782 = vsub.s32 5, %v781
    %v783 = vrot.slane %v403, %v782
    %v784 = vlaneseq
    %v785 = vshrl.u32 %v784, 7
    %v786 = vsub.s32 5, %v785
    %v787 = vrot.slane %v404, %v786
    %v788 = vlaneseq
    %v789 = vshrl.u32 %v788, 7
    %v790 = vsub.s32 5, %v789
    %v791 = vrot.slane %v405, %v790
    %v792 = vlaneseq
    %v793 = vshrl.u32 %v792, 7
    %v794 = vsub.s32 5, %v793
    %v795 = vrot.slane %v406, %v794
    %v796 = vmul.f32 %v774, %v783
    %v797 = vmul.f32 %v774, %v787
    %v798 = vmul.f32 %v774, %v791
    %v799 = vmul.f32 %v774, %v795
    %v800 = vmul.f32 %v778, %v783
    %v801 = vmul.f32 %v778, %v787
    %v802 = vmul.f32 %v778, %v791
    %v803 = vmul.f32 %v778, %v795
    %v804 = vmul.f32 %v768, %v796
    %v805 = vmul.f32 %v766, %v797
    %v806 = vmul.f32 %v764, %v798
    %v807 = vmul.f32 %v770, %v799
    %v808 = vmul.f32 %v769, %v800
    %v809 = vmul.f32 %v767, %v801
    %v810 = vmul.f32 %v765, %v802
    %v811 = vmul.f32 %v771, %v803
    %v812 = vadd.f32 %v739, %v804
    %v813 = vadd.f32 %v740, %v805
    %v814 = vadd.f32 %v741, %v806
    %v815 = vadd.f32 %v742, %v807
    %v816 = vadd.f32 %v743, %v808
    %v817 = vadd.f32 %v744, %v809
    %v818 = vadd.f32 %v745, %v810
    %v819 = vadd.f32 %v746, %v811
    %820 = vrot.lane.b32.xlu0 %v393, 113
    %v821 = vpop.permute.xlu0 %820
    %822 = vrot.lane.b32.xlu0 %v397, 113
    %v823 = vpop.permute.xlu0 %822
    %824 = vrot.lane.b32.xlu0 %v394, 113
    %v825 = vpop.permute.xlu0 %824
    %826 = vrot.lane.b32.xlu0 %v398, 113
    %v827 = vpop.permute.xlu0 %826
    %828 = vrot.lane.b32.xlu0 %v395, 113
    %v829 = vpop.permute.xlu0 %828
    %830 = vrot.lane.b32.xlu0 %v399, 113
    %v831 = vpop.permute.xlu0 %830
    %832 = vrot.lane.b32.xlu0 %v396, 113
    %v833 = vpop.permute.xlu0 %832
    %834 = vrot.lane.b32.xlu0 %v400, 113
    %v835 = vpop.permute.xlu0 %834
    %vm836 = vcmp.lt.s32.totalorder %v428, 113
    %v837 = vsel %vm836, %v829, %v833
    %v838 = vsel %vm836, %v831, %v835
    %v839 = vsel %vm836, %v825, %v829
    %v840 = vsel %vm836, %v827, %v831
    %v841 = vsel %vm836, %v821, %v825
    %v842 = vsel %vm836, %v823, %v827
    %v843 = vsel %vm836, %v833, %v821
    %v844 = vsel %vm836, %v835, %v823
    %845 = vset.pattern.permute.xlu0 6
    %846 = vperm.xlu0 %845, %v401
    %v847 = vpop.permute.xlu0 %846
    %849 = vset.pattern.permute.xlu0 6
    %850 = vperm.xlu0 %849, %v402
    %v851 = vpop.permute.xlu0 %850
    %v853 = vlaneseq
    %v854 = vshrl.u32 %v853, 7
    %v855 = vsub.s32 6, %v854
    %v856 = vrot.slane %v403, %v855
    %v857 = vlaneseq
    %v858 = vshrl.u32 %v857, 7
    %v859 = vsub.s32 6, %v858
    %v860 = vrot.slane %v404, %v859
    %v861 = vlaneseq
    %v862 = vshrl.u32 %v861, 7
    %v863 = vsub.s32 6, %v862
    %v864 = vrot.slane %v405, %v863
    %v865 = vlaneseq
    %v866 = vshrl.u32 %v865, 7
    %v867 = vsub.s32 6, %v866
    %v868 = vrot.slane %v406, %v867
    %v869 = vmul.f32 %v847, %v856
    %v870 = vmul.f32 %v847, %v860
    %v871 = vmul.f32 %v847, %v864
    %v872 = vmul.f32 %v847, %v868
    %v873 = vmul.f32 %v851, %v856
    %v874 = vmul.f32 %v851, %v860
    %v875 = vmul.f32 %v851, %v864
    %v876 = vmul.f32 %v851, %v868
    %v877 = vmul.f32 %v841, %v869
    %v878 = vmul.f32 %v839, %v870
    %v879 = vmul.f32 %v837, %v871
    %v880 = vmul.f32 %v843, %v872
    %v881 = vmul.f32 %v842, %v873
    %v882 = vmul.f32 %v840, %v874
    %v883 = vmul.f32 %v838, %v875
    %v884 = vmul.f32 %v844, %v876
    %v885 = vadd.f32 %v812, %v877
    %v886 = vadd.f32 %v813, %v878
    %v887 = vadd.f32 %v814, %v879
    %v888 = vadd.f32 %v815, %v880
    %v889 = vadd.f32 %v816, %v881
    %v890 = vadd.f32 %v817, %v882
    %v891 = vadd.f32 %v818, %v883
    %v892 = vadd.f32 %v819, %v884
    %893 = vrot.lane.b32.xlu0 %v393, 112
    %v894 = vpop.permute.xlu0 %893
    %895 = vrot.lane.b32.xlu0 %v397, 112
    %v896 = vpop.permute.xlu0 %895
    %897 = vrot.lane.b32.xlu0 %v394, 112
    %v898 = vpop.permute.xlu0 %897
    %899 = vrot.lane.b32.xlu0 %v398, 112
    %v900 = vpop.permute.xlu0 %899
    %901 = vrot.lane.b32.xlu0 %v395, 112
    %v902 = vpop.permute.xlu0 %901
    %903 = vrot.lane.b32.xlu0 %v399, 112
    %v904 = vpop.permute.xlu0 %903
    %905 = vrot.lane.b32.xlu0 %v396, 112
    %v906 = vpop.permute.xlu0 %905
    %907 = vrot.lane.b32.xlu0 %v400, 112
    %v908 = vpop.permute.xlu0 %907
    %vm909 = vcmp.lt.s32.totalorder %v428, 112
    %v910 = vsel %vm909, %v902, %v906
    %v911 = vsel %vm909, %v904, %v908
    %v912 = vsel %vm909, %v898, %v902
    %v913 = vsel %vm909, %v900, %v904
    %v914 = vsel %vm909, %v894, %v898
    %v915 = vsel %vm909, %v896, %v900
    %v916 = vsel %vm909, %v906, %v894
    %v917 = vsel %vm909, %v908, %v896
    %918 = vset.pattern.permute.xlu0 7
    %919 = vperm.xlu0 %918, %v401
    %v920 = vpop.permute.xlu0 %919
    %922 = vset.pattern.permute.xlu0 7
    %923 = vperm.xlu0 %922, %v402
    %v924 = vpop.permute.xlu0 %923
    %v926 = vlaneseq
    %v927 = vshrl.u32 %v926, 7
    %v928 = vsub.s32 7, %v927
    %v929 = vrot.slane %v403, %v928
    %v930 = vlaneseq
    %v931 = vshrl.u32 %v930, 7
    %v932 = vsub.s32 7, %v931
    %v933 = vrot.slane %v404, %v932
    %v934 = vlaneseq
    %v935 = vshrl.u32 %v934, 7
    %v936 = vsub.s32 7, %v935
    %v937 = vrot.slane %v405, %v936
    %v938 = vlaneseq
    %v939 = vshrl.u32 %v938, 7
    %v940 = vsub.s32 7, %v939
    %v941 = vrot.slane %v406, %v940
    %v942 = vmul.f32 %v920, %v929
    %v943 = vmul.f32 %v920, %v933
    %v944 = vmul.f32 %v920, %v937
    %v945 = vmul.f32 %v920, %v941
    %v946 = vmul.f32 %v924, %v929
    %v947 = vmul.f32 %v924, %v933
    %v948 = vmul.f32 %v924, %v937
    %v949 = vmul.f32 %v924, %v941
    %v950 = vmul.f32 %v914, %v942
    %v951 = vmul.f32 %v912, %v943
    %v952 = vmul.f32 %v910, %v944
    %v953 = vmul.f32 %v916, %v945
    %v954 = vmul.f32 %v915, %v946
    %v955 = vmul.f32 %v913, %v947
    %v956 = vmul.f32 %v911, %v948
    %v957 = vmul.f32 %v917, %v949
    %v958 = vadd.f32 %v885, %v950
    %v959 = vadd.f32 %v886, %v951
    %v960 = vadd.f32 %v887, %v952
    %v961 = vadd.f32 %v888, %v953
    %v962 = vadd.f32 %v889, %v954
    %v963 = vadd.f32 %v890, %v955
    %v964 = vadd.f32 %v891, %v956
    %v965 = vadd.f32 %v892, %v957
    %966 = vrot.lane.b32.xlu0 %v393, 111
    %v967 = vpop.permute.xlu0 %966
    %968 = vrot.lane.b32.xlu0 %v397, 111
    %v969 = vpop.permute.xlu0 %968
    %970 = vrot.lane.b32.xlu0 %v394, 111
    %v971 = vpop.permute.xlu0 %970
    %972 = vrot.lane.b32.xlu0 %v398, 111
    %v973 = vpop.permute.xlu0 %972
    %974 = vrot.lane.b32.xlu0 %v395, 111
    %v975 = vpop.permute.xlu0 %974
    %976 = vrot.lane.b32.xlu0 %v399, 111
    %v977 = vpop.permute.xlu0 %976
    %978 = vrot.lane.b32.xlu0 %v396, 111
    %v979 = vpop.permute.xlu0 %978
    %980 = vrot.lane.b32.xlu0 %v400, 111
    %v981 = vpop.permute.xlu0 %980
    %vm982 = vcmp.lt.s32.totalorder %v428, 111
    %v983 = vsel %vm982, %v975, %v979
    %v984 = vsel %vm982, %v977, %v981
    %v985 = vsel %vm982, %v971, %v975
    %v986 = vsel %vm982, %v973, %v977
    %v987 = vsel %vm982, %v967, %v971
    %v988 = vsel %vm982, %v969, %v973
    %v989 = vsel %vm982, %v979, %v967
    %v990 = vsel %vm982, %v981, %v969
    %991 = vset.pattern.permute.xlu0 8
    %992 = vperm.xlu0 %991, %v401
    %v993 = vpop.permute.xlu0 %992
    %995 = vset.pattern.permute.xlu0 8
    %996 = vperm.xlu0 %995, %v402
    %v997 = vpop.permute.xlu0 %996
    %v999 = vlaneseq
    %v1000 = vshrl.u32 %v999, 7
    %v1001 = vsub.s32 0, %v1000
    %v1002 = vrot.slane %v407, %v1001
    %v1003 = vlaneseq
    %v1004 = vshrl.u32 %v1003, 7
    %v1005 = vsub.s32 0, %v1004
    %v1006 = vrot.slane %v408, %v1005
    %v1007 = vlaneseq
    %v1008 = vshrl.u32 %v1007, 7
    %v1009 = vsub.s32 0, %v1008
    %v1010 = vrot.slane %v409, %v1009
    %v1011 = vlaneseq
    %v1012 = vshrl.u32 %v1011, 7
    %v1013 = vsub.s32 0, %v1012
    %v1014 = vrot.slane %v410, %v1013
    %v1015 = vmul.f32 %v993, %v1002
    %v1016 = vmul.f32 %v993, %v1006
    %v1017 = vmul.f32 %v993, %v1010
    %v1018 = vmul.f32 %v993, %v1014
    %v1019 = vmul.f32 %v997, %v1002
    %v1020 = vmul.f32 %v997, %v1006
    %v1021 = vmul.f32 %v997, %v1010
    %v1022 = vmul.f32 %v997, %v1014
    %v1023 = vmul.f32 %v987, %v1015
    %v1024 = vmul.f32 %v985, %v1016
    %v1025 = vmul.f32 %v983, %v1017
    %v1026 = vmul.f32 %v989, %v1018
    %v1027 = vmul.f32 %v988, %v1019
    %v1028 = vmul.f32 %v986, %v1020
    %v1029 = vmul.f32 %v984, %v1021
    %v1030 = vmul.f32 %v990, %v1022
    %v1031 = vadd.f32 %v958, %v1023
    %v1032 = vadd.f32 %v959, %v1024
    %v1033 = vadd.f32 %v960, %v1025
    %v1034 = vadd.f32 %v961, %v1026
    %v1035 = vadd.f32 %v962, %v1027
    %v1036 = vadd.f32 %v963, %v1028
    %v1037 = vadd.f32 %v964, %v1029
    %v1038 = vadd.f32 %v965, %v1030
    %v1039 = vld [vmem:[%s6] sm:$0xff]
    %v1040 = vld [vmem:[%s6 + $0x8] sm:$0xff]
    %1042 = vset.pattern.permute.xlu0 0
    %1043 = vperm.xlu0 %1042, %v1039
    %v1044 = vpop.permute.xlu0 %1043
    %1047 = vset.pattern.permute.xlu0 0
    %1048 = vperm.xlu0 %1047, %v1040
    %v1049 = vpop.permute.xlu0 %1048
    %v1051 = vadd.f32 %v1031, %v1044
    %v1052 = vadd.f32 %v1032, %v1044
    %v1053 = vadd.f32 %v1033, %v1044
    %v1054 = vadd.f32 %v1034, %v1044
    %v1055 = vadd.f32 %v1035, %v1049
    %v1056 = vadd.f32 %v1036, %v1049
    %v1057 = vadd.f32 %v1037, %v1049
    %v1058 = vadd.f32 %v1038, %v1049
    %v1059 = vmax.f32 %v1051, 0.0
    %v1060 = vmax.f32 %v1052, 0.0
    %v1061 = vmax.f32 %v1053, 0.0
    %v1062 = vmax.f32 %v1054, 0.0
    %v1063 = vmax.f32 %v1055, 0.0
    %v1064 = vmax.f32 %v1056, 0.0
    %v1065 = vmax.f32 %v1057, 0.0
    %v1066 = vmax.f32 %v1058, 0.0
    %v1067 = vmin.f32 %v1059, 6.0
    %v1068 = vmin.f32 %v1060, 6.0
    %v1069 = vmin.f32 %v1061, 6.0
    %v1070 = vmin.f32 %v1062, 6.0
    %v1071 = vmin.f32 %v1063, 6.0
    %v1072 = vmin.f32 %v1064, 6.0
    %v1073 = vmin.f32 %v1065, 6.0
    %v1074 = vmin.f32 %v1066, 6.0
    %v1075 = vld [vmem:[%s2] sm:$0x3]
    %v1076 = vld [vmem:[%s7] sm:$0xff]
    %v1077 = vld [vmem:[%s7 + $0x8] sm:$0xff]
    %v1078 = vld [vmem:[%s8] sm:$0x1]
    %v1079 = vld [vmem:[%s9] sm:$0xff]
    %v1080 = vld [vmem:[%s9 + $0x8] sm:$0xff]
    %v1081 = vld [vmem:[%s10] sm:$0xff]
    %v1082 = vld [vmem:[%s10 + $0x8] sm:$0xff]
    %v1083 = vld [vmem:[%s12] sm:$0xff]
    %v1085 = vlaneseq
    %v1086 = vshrl.u32 %v1085, 7
    %v1087 = vsub.s32 0, %v1086
    %v1088 = vrot.slane %v1075, %v1087
    %v1089 = vlaneseq
    %v1090 = vshrl.u32 %v1089, 7
    %v1091 = vsub.s32 1, %v1090
    %v1092 = vrot.slane %v1075, %v1091
    %v1095 = vmul.f32 %v1067, %v1088
    %v1096 = vmul.f32 %v1068, %v1092
    %v1097 = vmul.f32 %v1071, %v1088
    %v1098 = vmul.f32 %v1072, %v1092
    %v1099 = vadd.f32 %v1095, %v1096
    %1100 = vadd.xlane.f32.xlu0 %v1099
    %v1101 = vpop.xlane.xlu0 %1100
    %v1102 = vadd.f32 %v1097, %v1098
    %1103 = vadd.xlane.f32.xlu0 %v1102
    %v1104 = vpop.xlane.xlu0 %1103
    %v1105 = vmul.f32 %v1076, %v1101
    %v1106 = vmul.f32 %v1077, %v1104
    %vm1107 = vcmask 64512
    %v1108 = vsel %vm1107, %v1105, 0.0
    %v1109 = vsel %vm1107, %v1106, 0.0
    %v1110 = vadd.f32 %v1108, %v1109
    %v1111 = vrot.slane %v1110, 4
    %v1112 = vadd.f32 %v1110, %v1111
    %v1113 = vrot.slane %v1112, 2
    %v1114 = vadd.f32 %v1112, %v1113
    %v1115 = vrot.slane %v1114, 1
    %v1116 = vadd.f32 %v1114, %v1115
    %v1117 = vadd.f32 %v1116, %v1078
    %v1118 = vmax.f32 %v1117, 0.0
    %v1119 = vlaneseq
    %v1120 = vshrl.u32 %v1119, 7
    %v1121 = vsub.s32 0, %v1120
    %v1122 = vrot.slane %v1118, %v1121
    %v1123 = vmul.f32 %v1079, %v1122
    %v1124 = vmul.f32 %v1080, %v1122
    %v1125 = vsel %vm1107, %v1123, 0.0
    %1126 = vadd.xlane.f32.xlu0 %v1125
    %v1127 = vpop.xlane.xlu0 %1126
    %v1128 = vsel %vm1107, %v1124, 0.0
    %1129 = vadd.xlane.f32.xlu0 %v1128
    %v1130 = vpop.xlane.xlu0 %1129
    %v1131 = vadd.f32 %v1127, %v1081
    %v1132 = vadd.f32 %v1130, %v1082
    %v1133 = vadd.f32 %v1131, 3.0
    %v1134 = vadd.f32 %v1132, 3.0
    %v1135 = vmax.f32 %v1133, 0.0
    %v1136 = vmax.f32 %v1134, 0.0
    %v1137 = vmin.f32 %v1135, 6.0
    %v1138 = vmin.f32 %v1136, 6.0
    %v1139 = vmul.f32 %v1137, 0.16666667
    %v1140 = vmul.f32 %v1138, 0.16666667
    %1142 = vset.pattern.permute.xlu0 0
    %1143 = vperm.xlu0 %1142, %v1139
    %v1144 = vpop.permute.xlu0 %1143
    %1147 = vset.pattern.permute.xlu0 0
    %1148 = vperm.xlu0 %1147, %v1140
    %v1149 = vpop.permute.xlu0 %1148
    %v1151 = vmul.f32 %v1067, %v1144
    %v1152 = vmul.f32 %v1068, %v1144
    %v1153 = vmul.f32 %v1071, %v1149
    %v1154 = vmul.f32 %v1072, %v1149
    %v1155 = vld [vmem:[%s11] sm:$0xff]
    %1157 = vset.pattern.permute.xlu0 0
    %1158 = vperm.xlu0 %1157, %v1155
    %v1159 = vpop.permute.xlu0 %1158
    %v1161 = vlaneseq
    %v1162 = vshrl.u32 %v1161, 7
    %v1163 = vsub.s32 0, %v1162
    %v1164 = vrot.slane %v1151, %v1163
    %v1165 = vlaneseq
    %v1166 = vshrl.u32 %v1165, 7
    %v1167 = vsub.s32 0, %v1166
    %v1168 = vrot.slane %v1152, %v1167
    %v1169 = vmul.f32 %v1159, %v1164
    %v1170 = vmul.f32 %v1159, %v1168
    %1171 = vset.pattern.permute.xlu0 1
    %1172 = vperm.xlu0 %1171, %v1155
    %v1173 = vpop.permute.xlu0 %1172
    %v1175 = vlaneseq
    %v1176 = vshrl.u32 %v1175, 7
    %v1177 = vsub.s32 1, %v1176
    %v1178 = vrot.slane %v1151, %v1177
    %v1179 = vlaneseq
    %v1180 = vshrl.u32 %v1179, 7
    %v1181 = vsub.s32 1, %v1180
    %v1182 = vrot.slane %v1152, %v1181
    %v1183 = vmul.f32 %v1173, %v1178
    %v1184 = vmul.f32 %v1173, %v1182
    %v1185 = vadd.f32 %v1169, %v1183
    %v1186 = vadd.f32 %v1170, %v1184
    %1187 = vset.pattern.permute.xlu0 2
    %1188 = vperm.xlu0 %1187, %v1155
    %v1189 = vpop.permute.xlu0 %1188
    %v1191 = vlaneseq
    %v1192 = vshrl.u32 %v1191, 7
    %v1193 = vsub.s32 2, %v1192
    %v1194 = vrot.slane %v1151, %v1193
    %v1195 = vlaneseq
    %v1196 = vshrl.u32 %v1195, 7
    %v1197 = vsub.s32 2, %v1196
    %v1198 = vrot.slane %v1152, %v1197
    %v1199 = vmul.f32 %v1189, %v1194
    %v1200 = vmul.f32 %v1189, %v1198
    %v1201 = vadd.f32 %v1185, %v1199
    %v1202 = vadd.f32 %v1186, %v1200
    %1203 = vset.pattern.permute.xlu0 3
    %1204 = vperm.xlu0 %1203, %v1155
    %v1205 = vpop.permute.xlu0 %1204
    %v1207 = vlaneseq
    %v1208 = vshrl.u32 %v1207, 7
    %v1209 = vsub.s32 3, %v1208
    %v1210 = vrot.slane %v1151, %v1209
    %v1211 = vlaneseq
    %v1212 = vshrl.u32 %v1211, 7
    %v1213 = vsub.s32 3, %v1212
    %v1214 = vrot.slane %v1152, %v1213
    %v1215 = vmul.f32 %v1205, %v1210
    %v1216 = vmul.f32 %v1205, %v1214
    %v1217 = vadd.f32 %v1201, %v1215
    %v1218 = vadd.f32 %v1202, %v1216
    %1219 = vset.pattern.permute.xlu0 4
    %1220 = vperm.xlu0 %1219, %v1155
    %v1221 = vpop.permute.xlu0 %1220
    %v1223 = vlaneseq
    %v1224 = vshrl.u32 %v1223, 7
    %v1225 = vsub.s32 4, %v1224
    %v1226 = vrot.slane %v1151, %v1225
    %v1227 = vlaneseq
    %v1228 = vshrl.u32 %v1227, 7
    %v1229 = vsub.s32 4, %v1228
    %v1230 = vrot.slane %v1152, %v1229
    %v1231 = vmul.f32 %v1221, %v1226
    %v1232 = vmul.f32 %v1221, %v1230
    %v1233 = vadd.f32 %v1217, %v1231
    %v1234 = vadd.f32 %v1218, %v1232
    %1235 = vset.pattern.permute.xlu0 5
    %1236 = vperm.xlu0 %1235, %v1155
    %v1237 = vpop.permute.xlu0 %1236
    %v1239 = vlaneseq
    %v1240 = vshrl.u32 %v1239, 7
    %v1241 = vsub.s32 5, %v1240
    %v1242 = vrot.slane %v1151, %v1241
    %v1243 = vlaneseq
    %v1244 = vshrl.u32 %v1243, 7
    %v1245 = vsub.s32 5, %v1244
    %v1246 = vrot.slane %v1152, %v1245
    %v1247 = vmul.f32 %v1237, %v1242
    %v1248 = vmul.f32 %v1237, %v1246
    %v1249 = vadd.f32 %v1233, %v1247
    %v1250 = vadd.f32 %v1234, %v1248
    %1251 = vset.pattern.permute.xlu0 6
    %1252 = vperm.xlu0 %1251, %v1155
    %v1253 = vpop.permute.xlu0 %1252
    %v1255 = vlaneseq
    %v1256 = vshrl.u32 %v1255, 7
    %v1257 = vsub.s32 6, %v1256
    %v1258 = vrot.slane %v1151, %v1257
    %v1259 = vlaneseq
    %v1260 = vshrl.u32 %v1259, 7
    %v1261 = vsub.s32 6, %v1260
    %v1262 = vrot.slane %v1152, %v1261
    %v1263 = vmul.f32 %v1253, %v1258
    %v1264 = vmul.f32 %v1253, %v1262
    %v1265 = vadd.f32 %v1249, %v1263
    %v1266 = vadd.f32 %v1250, %v1264
    %1267 = vset.pattern.permute.xlu0 7
    %1268 = vperm.xlu0 %1267, %v1155
    %v1269 = vpop.permute.xlu0 %1268
    %v1271 = vlaneseq
    %v1272 = vshrl.u32 %v1271, 7
    %v1273 = vsub.s32 7, %v1272
    %v1274 = vrot.slane %v1151, %v1273
    %v1275 = vlaneseq
    %v1276 = vshrl.u32 %v1275, 7
    %v1277 = vsub.s32 7, %v1276
    %v1278 = vrot.slane %v1152, %v1277
    %v1279 = vmul.f32 %v1269, %v1274
    %v1280 = vmul.f32 %v1269, %v1278
    %v1281 = vadd.f32 %v1265, %v1279
    %v1282 = vadd.f32 %v1266, %v1280
    %1283 = vset.pattern.permute.xlu0 8
    %1284 = vperm.xlu0 %1283, %v1155
    %v1285 = vpop.permute.xlu0 %1284
    %v1287 = vlaneseq
    %v1288 = vshrl.u32 %v1287, 7
    %v1289 = vsub.s32 0, %v1288
    %v1290 = vrot.slane %v1153, %v1289
    %v1291 = vlaneseq
    %v1292 = vshrl.u32 %v1291, 7
    %v1293 = vsub.s32 0, %v1292
    %v1294 = vrot.slane %v1154, %v1293
    %v1295 = vmul.f32 %v1285, %v1290
    %v1296 = vmul.f32 %v1285, %v1294
    %v1297 = vadd.f32 %v1281, %v1295
    %v1298 = vadd.f32 %v1282, %v1296
    %1299 = vset.pattern.permute.xlu0 9
    %1300 = vperm.xlu0 %1299, %v1155
    %v1301 = vpop.permute.xlu0 %1300
    %v1303 = vlaneseq
    %v1304 = vshrl.u32 %v1303, 7
    %v1305 = vsub.s32 1, %v1304
    %v1306 = vrot.slane %v1153, %v1305
    %v1307 = vlaneseq
    %v1308 = vshrl.u32 %v1307, 7
    %v1309 = vsub.s32 1, %v1308
    %v1310 = vrot.slane %v1154, %v1309
    %v1311 = vmul.f32 %v1301, %v1306
    %v1312 = vmul.f32 %v1301, %v1310
    %v1313 = vadd.f32 %v1297, %v1311
    %v1314 = vadd.f32 %v1298, %v1312
    %1315 = vset.pattern.permute.xlu0 10
    %1316 = vperm.xlu0 %1315, %v1155
    %v1317 = vpop.permute.xlu0 %1316
    %v1319 = vlaneseq
    %v1320 = vshrl.u32 %v1319, 7
    %v1321 = vsub.s32 2, %v1320
    %v1322 = vrot.slane %v1153, %v1321
    %v1323 = vlaneseq
    %v1324 = vshrl.u32 %v1323, 7
    %v1325 = vsub.s32 2, %v1324
    %v1326 = vrot.slane %v1154, %v1325
    %v1327 = vmul.f32 %v1317, %v1322
    %v1328 = vmul.f32 %v1317, %v1326
    %v1329 = vadd.f32 %v1313, %v1327
    %v1330 = vadd.f32 %v1314, %v1328
    %1331 = vset.pattern.permute.xlu0 11
    %1332 = vperm.xlu0 %1331, %v1155
    %v1333 = vpop.permute.xlu0 %1332
    %v1335 = vlaneseq
    %v1336 = vshrl.u32 %v1335, 7
    %v1337 = vsub.s32 3, %v1336
    %v1338 = vrot.slane %v1153, %v1337
    %v1339 = vlaneseq
    %v1340 = vshrl.u32 %v1339, 7
    %v1341 = vsub.s32 3, %v1340
    %v1342 = vrot.slane %v1154, %v1341
    %v1343 = vmul.f32 %v1333, %v1338
    %v1344 = vmul.f32 %v1333, %v1342
    %v1345 = vadd.f32 %v1329, %v1343
    %v1346 = vadd.f32 %v1330, %v1344
    %1347 = vset.pattern.permute.xlu0 12
    %1348 = vperm.xlu0 %1347, %v1155
    %v1349 = vpop.permute.xlu0 %1348
    %v1351 = vlaneseq
    %v1352 = vshrl.u32 %v1351, 7
    %v1353 = vsub.s32 4, %v1352
    %v1354 = vrot.slane %v1153, %v1353
    %v1355 = vlaneseq
    %v1356 = vshrl.u32 %v1355, 7
    %v1357 = vsub.s32 4, %v1356
    %v1358 = vrot.slane %v1154, %v1357
    %v1359 = vmul.f32 %v1349, %v1354
    %v1360 = vmul.f32 %v1349, %v1358
    %v1361 = vadd.f32 %v1345, %v1359
    %v1362 = vadd.f32 %v1346, %v1360
    %1363 = vset.pattern.permute.xlu0 13
    %1364 = vperm.xlu0 %1363, %v1155
    %v1365 = vpop.permute.xlu0 %1364
    %v1367 = vlaneseq
    %v1368 = vshrl.u32 %v1367, 7
    %v1369 = vsub.s32 5, %v1368
    %v1370 = vrot.slane %v1153, %v1369
    %v1371 = vlaneseq
    %v1372 = vshrl.u32 %v1371, 7
    %v1373 = vsub.s32 5, %v1372
    %v1374 = vrot.slane %v1154, %v1373
    %v1375 = vmul.f32 %v1365, %v1370
    %v1376 = vmul.f32 %v1365, %v1374
    %v1377 = vadd.f32 %v1361, %v1375
    %v1378 = vadd.f32 %v1362, %v1376
    %1379 = vset.pattern.permute.xlu0 14
    %1380 = vperm.xlu0 %1379, %v1155
    %v1381 = vpop.permute.xlu0 %1380
    %v1383 = vlaneseq
    %v1384 = vshrl.u32 %v1383, 7
    %v1385 = vsub.s32 6, %v1384
    %v1386 = vrot.slane %v1153, %v1385
    %v1387 = vlaneseq
    %v1388 = vshrl.u32 %v1387, 7
    %v1389 = vsub.s32 6, %v1388
    %v1390 = vrot.slane %v1154, %v1389
    %v1391 = vmul.f32 %v1381, %v1386
    %v1392 = vmul.f32 %v1381, %v1390
    %v1393 = vadd.f32 %v1377, %v1391
    %v1394 = vadd.f32 %v1378, %v1392
    %1395 = vset.pattern.permute.xlu0 15
    %1396 = vperm.xlu0 %1395, %v1155
    %v1397 = vpop.permute.xlu0 %1396
    %v1399 = vlaneseq
    %v1400 = vshrl.u32 %v1399, 7
    %v1401 = vsub.s32 7, %v1400
    %v1402 = vrot.slane %v1153, %v1401
    %v1403 = vlaneseq
    %v1404 = vshrl.u32 %v1403, 7
    %v1405 = vsub.s32 7, %v1404
    %v1406 = vrot.slane %v1154, %v1405
    %v1407 = vmul.f32 %v1397, %v1402
    %v1408 = vmul.f32 %v1397, %v1406
    %v1409 = vadd.f32 %v1393, %v1407
    %v1410 = vadd.f32 %v1394, %v1408
    %1412 = vset.pattern.permute.xlu0 0
    %1413 = vperm.xlu0 %1412, %v1083
    %v1414 = vpop.permute.xlu0 %1413
    %v1416 = vadd.f32 %v1409, %v1414
    %v1417 = vadd.f32 %v1410, %v1414
    %v1418 = vadd.f32 %v1416, %v45
    %v1419 = vadd.f32 %v1417, %v46
    %1420 = vst [vmem:[#allocation2] sm:$0xff] %v1418
    %1421 = vst [vmem:[#allocation2 + $0x8] sm:$0xff] %v1419
    %v1422 = vmul.f32 %v1069, %v1088
    %v1423 = vmul.f32 %v1070, %v1092
    %v1424 = vmul.f32 %v1073, %v1088
    %v1425 = vmul.f32 %v1074, %v1092
    %v1426 = vadd.f32 %v1422, %v1423
    %1427 = vadd.xlane.f32.xlu0 %v1426
    %v1428 = vpop.xlane.xlu0 %1427
    %v1429 = vadd.f32 %v1424, %v1425
    %1430 = vadd.xlane.f32.xlu0 %v1429
    %v1431 = vpop.xlane.xlu0 %1430
    %v1432 = vmul.f32 %v1076, %v1428
    %v1433 = vmul.f32 %v1077, %v1431
    %v1434 = vsel %vm1107, %v1432, 0.0
    %v1435 = vsel %vm1107, %v1433, 0.0
    %v1436 = vadd.f32 %v1434, %v1435
    %v1437 = vrot.slane %v1436, 4
    %v1438 = vadd.f32 %v1436, %v1437
    %v1439 = vrot.slane %v1438, 2
    %v1440 = vadd.f32 %v1438, %v1439
    %v1441 = vrot.slane %v1440, 1
    %v1442 = vadd.f32 %v1440, %v1441
    %v1443 = vadd.f32 %v1442, %v1078
    %v1444 = vmax.f32 %v1443, 0.0
    %v1445 = vlaneseq
    %v1446 = vshrl.u32 %v1445, 7
    %v1447 = vsub.s32 0, %v1446
    %v1448 = vrot.slane %v1444, %v1447
    %v1449 = vmul.f32 %v1079, %v1448
    %v1450 = vmul.f32 %v1080, %v1448
    %v1451 = vsel %vm1107, %v1449, 0.0
    %1452 = vadd.xlane.f32.xlu0 %v1451
    %v1453 = vpop.xlane.xlu0 %1452
    %v1454 = vsel %vm1107, %v1450, 0.0
    %1455 = vadd.xlane.f32.xlu0 %v1454
    %v1456 = vpop.xlane.xlu0 %1455
    %v1457 = vadd.f32 %v1453, %v1081
    %v1458 = vadd.f32 %v1456, %v1082
    %v1459 = vadd.f32 %v1457, 3.0
    %v1460 = vadd.f32 %v1458, 3.0
    %v1461 = vmax.f32 %v1459, 0.0
    %v1462 = vmax.f32 %v1460, 0.0
    %v1463 = vmin.f32 %v1461, 6.0
    %v1464 = vmin.f32 %v1462, 6.0
    %v1465 = vmul.f32 %v1463, 0.16666667
    %v1466 = vmul.f32 %v1464, 0.16666667
    %1468 = vset.pattern.permute.xlu0 0
    %1469 = vperm.xlu0 %1468, %v1465
    %v1470 = vpop.permute.xlu0 %1469
    %1473 = vset.pattern.permute.xlu0 0
    %1474 = vperm.xlu0 %1473, %v1466
    %v1475 = vpop.permute.xlu0 %1474
    %v1477 = vmul.f32 %v1069, %v1470
    %v1478 = vmul.f32 %v1070, %v1470
    %v1479 = vmul.f32 %v1073, %v1475
    %v1480 = vmul.f32 %v1074, %v1475
    %v1481 = vld [vmem:[%s11] sm:$0xff]
    %1483 = vset.pattern.permute.xlu0 0
    %1484 = vperm.xlu0 %1483, %v1481
    %v1485 = vpop.permute.xlu0 %1484
    %v1487 = vlaneseq
    %v1488 = vshrl.u32 %v1487, 7
    %v1489 = vsub.s32 0, %v1488
    %v1490 = vrot.slane %v1477, %v1489
    %v1491 = vlaneseq
    %v1492 = vshrl.u32 %v1491, 7
    %v1493 = vsub.s32 0, %v1492
    %v1494 = vrot.slane %v1478, %v1493
    %v1495 = vmul.f32 %v1485, %v1490
    %v1496 = vmul.f32 %v1485, %v1494
    %1497 = vset.pattern.permute.xlu0 1
    %1498 = vperm.xlu0 %1497, %v1481
    %v1499 = vpop.permute.xlu0 %1498
    %v1501 = vlaneseq
    %v1502 = vshrl.u32 %v1501, 7
    %v1503 = vsub.s32 1, %v1502
    %v1504 = vrot.slane %v1477, %v1503
    %v1505 = vlaneseq
    %v1506 = vshrl.u32 %v1505, 7
    %v1507 = vsub.s32 1, %v1506
    %v1508 = vrot.slane %v1478, %v1507
    %v1509 = vmul.f32 %v1499, %v1504
    %v1510 = vmul.f32 %v1499, %v1508
    %v1511 = vadd.f32 %v1495, %v1509
    %v1512 = vadd.f32 %v1496, %v1510
    %1513 = vset.pattern.permute.xlu0 2
    %1514 = vperm.xlu0 %1513, %v1481
    %v1515 = vpop.permute.xlu0 %1514
    %v1517 = vlaneseq
    %v1518 = vshrl.u32 %v1517, 7
    %v1519 = vsub.s32 2, %v1518
    %v1520 = vrot.slane %v1477, %v1519
    %v1521 = vlaneseq
    %v1522 = vshrl.u32 %v1521, 7
    %v1523 = vsub.s32 2, %v1522
    %v1524 = vrot.slane %v1478, %v1523
    %v1525 = vmul.f32 %v1515, %v1520
    %v1526 = vmul.f32 %v1515, %v1524
    %v1527 = vadd.f32 %v1511, %v1525
    %v1528 = vadd.f32 %v1512, %v1526
    %1529 = vset.pattern.permute.xlu0 3
    %1530 = vperm.xlu0 %1529, %v1481
    %v1531 = vpop.permute.xlu0 %1530
    %v1533 = vlaneseq
    %v1534 = vshrl.u32 %v1533, 7
    %v1535 = vsub.s32 3, %v1534
    %v1536 = vrot.slane %v1477, %v1535
    %v1537 = vlaneseq
    %v1538 = vshrl.u32 %v1537, 7
    %v1539 = vsub.s32 3, %v1538
    %v1540 = vrot.slane %v1478, %v1539
    %v1541 = vmul.f32 %v1531, %v1536
    %v1542 = vmul.f32 %v1531, %v1540
    %v1543 = vadd.f32 %v1527, %v1541
    %v1544 = vadd.f32 %v1528, %v1542
    %1545 = vset.pattern.permute.xlu0 4
    %1546 = vperm.xlu0 %1545, %v1481
    %v1547 = vpop.permute.xlu0 %1546
    %v1549 = vlaneseq
    %v1550 = vshrl.u32 %v1549, 7
    %v1551 = vsub.s32 4, %v1550
    %v1552 = vrot.slane %v1477, %v1551
    %v1553 = vlaneseq
    %v1554 = vshrl.u32 %v1553, 7
    %v1555 = vsub.s32 4, %v1554
    %v1556 = vrot.slane %v1478, %v1555
    %v1557 = vmul.f32 %v1547, %v1552
    %v1558 = vmul.f32 %v1547, %v1556
    %v1559 = vadd.f32 %v1543, %v1557
    %v1560 = vadd.f32 %v1544, %v1558
    %1561 = vset.pattern.permute.xlu0 5
    %1562 = vperm.xlu0 %1561, %v1481
    %v1563 = vpop.permute.xlu0 %1562
    %v1565 = vlaneseq
    %v1566 = vshrl.u32 %v1565, 7
    %v1567 = vsub.s32 5, %v1566
    %v1568 = vrot.slane %v1477, %v1567
    %v1569 = vlaneseq
    %v1570 = vshrl.u32 %v1569, 7
    %v1571 = vsub.s32 5, %v1570
    %v1572 = vrot.slane %v1478, %v1571
    %v1573 = vmul.f32 %v1563, %v1568
    %v1574 = vmul.f32 %v1563, %v1572
    %v1575 = vadd.f32 %v1559, %v1573
    %v1576 = vadd.f32 %v1560, %v1574
    %1577 = vset.pattern.permute.xlu0 6
    %1578 = vperm.xlu0 %1577, %v1481
    %v1579 = vpop.permute.xlu0 %1578
    %v1581 = vlaneseq
    %v1582 = vshrl.u32 %v1581, 7
    %v1583 = vsub.s32 6, %v1582
    %v1584 = vrot.slane %v1477, %v1583
    %v1585 = vlaneseq
    %v1586 = vshrl.u32 %v1585, 7
    %v1587 = vsub.s32 6, %v1586
    %v1588 = vrot.slane %v1478, %v1587
    %v1589 = vmul.f32 %v1579, %v1584
    %v1590 = vmul.f32 %v1579, %v1588
    %v1591 = vadd.f32 %v1575, %v1589
    %v1592 = vadd.f32 %v1576, %v1590
    %1593 = vset.pattern.permute.xlu0 7
    %1594 = vperm.xlu0 %1593, %v1481
    %v1595 = vpop.permute.xlu0 %1594
    %v1597 = vlaneseq
    %v1598 = vshrl.u32 %v1597, 7
    %v1599 = vsub.s32 7, %v1598
    %v1600 = vrot.slane %v1477, %v1599
    %v1601 = vlaneseq
    %v1602 = vshrl.u32 %v1601, 7
    %v1603 = vsub.s32 7, %v1602
    %v1604 = vrot.slane %v1478, %v1603
    %v1605 = vmul.f32 %v1595, %v1600
    %v1606 = vmul.f32 %v1595, %v1604
    %v1607 = vadd.f32 %v1591, %v1605
    %v1608 = vadd.f32 %v1592, %v1606
    %1609 = vset.pattern.permute.xlu0 8
    %1610 = vperm.xlu0 %1609, %v1481
    %v1611 = vpop.permute.xlu0 %1610
    %v1613 = vlaneseq
    %v1614 = vshrl.u32 %v1613, 7
    %v1615 = vsub.s32 0, %v1614
    %v1616 = vrot.slane %v1479, %v1615
    %v1617 = vlaneseq
    %v1618 = vshrl.u32 %v1617, 7
    %v1619 = vsub.s32 0, %v1618
    %v1620 = vrot.slane %v1480, %v1619
    %v1621 = vmul.f32 %v1611, %v1616
    %v1622 = vmul.f32 %v1611, %v1620
    %v1623 = vadd.f32 %v1607, %v1621
    %v1624 = vadd.f32 %v1608, %v1622
    %1625 = vset.pattern.permute.xlu0 9
    %1626 = vperm.xlu0 %1625, %v1481
    %v1627 = vpop.permute.xlu0 %1626
    %v1629 = vlaneseq
    %v1630 = vshrl.u32 %v1629, 7
    %v1631 = vsub.s32 1, %v1630
    %v1632 = vrot.slane %v1479, %v1631
    %v1633 = vlaneseq
    %v1634 = vshrl.u32 %v1633, 7
    %v1635 = vsub.s32 1, %v1634
    %v1636 = vrot.slane %v1480, %v1635
    %v1637 = vmul.f32 %v1627, %v1632
    %v1638 = vmul.f32 %v1627, %v1636
    %v1639 = vadd.f32 %v1623, %v1637
    %v1640 = vadd.f32 %v1624, %v1638
    %1641 = vset.pattern.permute.xlu0 10
    %1642 = vperm.xlu0 %1641, %v1481
    %v1643 = vpop.permute.xlu0 %1642
    %v1645 = vlaneseq
    %v1646 = vshrl.u32 %v1645, 7
    %v1647 = vsub.s32 2, %v1646
    %v1648 = vrot.slane %v1479, %v1647
    %v1649 = vlaneseq
    %v1650 = vshrl.u32 %v1649, 7
    %v1651 = vsub.s32 2, %v1650
    %v1652 = vrot.slane %v1480, %v1651
    %v1653 = vmul.f32 %v1643, %v1648
    %v1654 = vmul.f32 %v1643, %v1652
    %v1655 = vadd.f32 %v1639, %v1653
    %v1656 = vadd.f32 %v1640, %v1654
    %1657 = vset.pattern.permute.xlu0 11
    %1658 = vperm.xlu0 %1657, %v1481
    %v1659 = vpop.permute.xlu0 %1658
    %v1661 = vlaneseq
    %v1662 = vshrl.u32 %v1661, 7
    %v1663 = vsub.s32 3, %v1662
    %v1664 = vrot.slane %v1479, %v1663
    %v1665 = vlaneseq
    %v1666 = vshrl.u32 %v1665, 7
    %v1667 = vsub.s32 3, %v1666
    %v1668 = vrot.slane %v1480, %v1667
    %v1669 = vmul.f32 %v1659, %v1664
    %v1670 = vmul.f32 %v1659, %v1668
    %v1671 = vadd.f32 %v1655, %v1669
    %v1672 = vadd.f32 %v1656, %v1670
    %1673 = vset.pattern.permute.xlu0 12
    %1674 = vperm.xlu0 %1673, %v1481
    %v1675 = vpop.permute.xlu0 %1674
    %v1677 = vlaneseq
    %v1678 = vshrl.u32 %v1677, 7
    %v1679 = vsub.s32 4, %v1678
    %v1680 = vrot.slane %v1479, %v1679
    %v1681 = vlaneseq
    %v1682 = vshrl.u32 %v1681, 7
    %v1683 = vsub.s32 4, %v1682
    %v1684 = vrot.slane %v1480, %v1683
    %v1685 = vmul.f32 %v1675, %v1680
    %v1686 = vmul.f32 %v1675, %v1684
    %v1687 = vadd.f32 %v1671, %v1685
    %v1688 = vadd.f32 %v1672, %v1686
    %1689 = vset.pattern.permute.xlu0 13
    %1690 = vperm.xlu0 %1689, %v1481
    %v1691 = vpop.permute.xlu0 %1690
    %v1693 = vlaneseq
    %v1694 = vshrl.u32 %v1693, 7
    %v1695 = vsub.s32 5, %v1694
    %v1696 = vrot.slane %v1479, %v1695
    %v1697 = vlaneseq
    %v1698 = vshrl.u32 %v1697, 7
    %v1699 = vsub.s32 5, %v1698
    %v1700 = vrot.slane %v1480, %v1699
    %v1701 = vmul.f32 %v1691, %v1696
    %v1702 = vmul.f32 %v1691, %v1700
    %v1703 = vadd.f32 %v1687, %v1701
    %v1704 = vadd.f32 %v1688, %v1702
    %1705 = vset.pattern.permute.xlu0 14
    %1706 = vperm.xlu0 %1705, %v1481
    %v1707 = vpop.permute.xlu0 %1706
    %v1709 = vlaneseq
    %v1710 = vshrl.u32 %v1709, 7
    %v1711 = vsub.s32 6, %v1710
    %v1712 = vrot.slane %v1479, %v1711
    %v1713 = vlaneseq
    %v1714 = vshrl.u32 %v1713, 7
    %v1715 = vsub.s32 6, %v1714
    %v1716 = vrot.slane %v1480, %v1715
    %v1717 = vmul.f32 %v1707, %v1712
    %v1718 = vmul.f32 %v1707, %v1716
    %v1719 = vadd.f32 %v1703, %v1717
    %v1720 = vadd.f32 %v1704, %v1718
    %1721 = vset.pattern.permute.xlu0 15
    %1722 = vperm.xlu0 %1721, %v1481
    %v1723 = vpop.permute.xlu0 %1722
    %v1725 = vlaneseq
    %v1726 = vshrl.u32 %v1725, 7
    %v1727 = vsub.s32 7, %v1726
    %v1728 = vrot.slane %v1479, %v1727
    %v1729 = vlaneseq
    %v1730 = vshrl.u32 %v1729, 7
    %v1731 = vsub.s32 7, %v1730
    %v1732 = vrot.slane %v1480, %v1731
    %v1733 = vmul.f32 %v1723, %v1728
    %v1734 = vmul.f32 %v1723, %v1732
    %v1735 = vadd.f32 %v1719, %v1733
    %v1736 = vadd.f32 %v1720, %v1734
    %v1737 = vadd.f32 %v1735, %v1414
    %v1738 = vadd.f32 %v1736, %v1414
    %v1739 = vadd.f32 %v1737, %v47
    %v1740 = vadd.f32 %v1738, %v48
    %1741 = vst [vmem:[#allocation2 + $0x10] sm:$0xff] %v1739
    %1742 = vst [vmem:[#allocation2 + $0x18] sm:$0xff] %v1740
    // Predicated region
    $region54: #{tpu_custom_call.1} parent=1 // pred_check
      _
    $region55: #{tpu_custom_call.1} parent=1 // pred_check_branch
      %1744 = sbr.rel (0) target = $region57
    $region56: #{tpu_custom_call.1} parent=1 // pred_region
      %s1746 = ssub.s32 512, 512
      %1747 = vsyncadd [#allocation3], %s1746
      %s1749 = sshll.u32 [#allocation2], 4
      %s1750 = int_to_ptr.vmem [resolvable:$true] %s1749
      %1752 = dma.vmem_to_hbm [thread:$0]  %s1750, 512, %s13, [#allocation3]
    $region57: #{tpu_custom_call.1} parent=1 // pred_fallthru
      _
    // Predicated region
    $region58: #{tpu_custom_call.1} parent=1 // pred_check
      _
    $region59: #{tpu_custom_call.1} parent=1 // pred_check_branch
      %1754 = sbr.rel (0) target = $region61
    $region60: #{tpu_custom_call.1} parent=1 // pred_region
      %1755 = dma.done [#allocation3], 512
    $region61: #{tpu_custom_call.1} parent=1 // pred_fallthru
      _
    %1756 = vsyncpa [#allocation3], 1

</llo_original>
